<compile_context>
chip_gen: v6e
topology: v6e:2x2x1
jax: 0.10.0
libtpu: 0.0.40
codegen_flags: <defaults>
</compile_context>

<pallas_src>
import functools
import math

import jax
import jax.numpy as jnp
from jax.experimental import pallas as pl
from jax.experimental.pallas import tpu as pltpu

LANE = 128
_VMEM_LIMIT = 32 * 1024 * 1024  # safe scoped limit on v5e/v6e/v7x


# ----------------------------- small helpers --------------------------------

def _round_up(x, m):
    return (x + m - 1) // m * m


def _pad_last(arr, target):
    pad = target - arr.shape[-1]
    if pad == 0:
        return arr
    cfg = [(0, 0)] * (arr.ndim - 1) + [(0, pad)]
    return jnp.pad(arr, cfg)


def _pad2(w, rows, cols):
    return jnp.pad(w, ((0, rows - w.shape[0]), (0, cols - w.shape[1])))


# ----------------------------- Pallas kernels -------------------------------

def _matmul_bn_kernel(a_ref, w_ref, s_ref, b_ref, o_ref, *, relu):
    """out = [relu]( (a @ w) * scale + bias )  -- 1x1 conv + folded BN (+ReLU)."""
    acc = jnp.dot(a_ref[...], w_ref[...], preferred_element_type=jnp.float32)
    y = acc * s_ref[...] + b_ref[...]
    if relu:
        y = jnp.maximum(y, 0.0)
    o_ref[...] = y.astype(o_ref.dtype)


def _matmul_bn_identity_res_kernel(a_ref, r_ref, w_ref, s_ref, b_ref, o_ref):
    """out = relu( (a @ w) * scale + bias + residual )  -- identity shortcut."""
    acc = jnp.dot(a_ref[...], w_ref[...], preferred_element_type=jnp.float32)
    y = acc * s_ref[...] + b_ref[...] + r_ref[...].astype(jnp.float32)
    o_ref[...] = jnp.maximum(y, 0.0).astype(o_ref.dtype)


def _matmul_bn_down_res_kernel(a_ref, x_ref, w_ref, s_ref, b_ref,
                               wd_ref, sd_ref, bd_ref, o_ref):
    """Fused: conv3+bn3 on `a`, downsample conv+bn on `x`, add, relu."""
    main = jnp.dot(a_ref[...], w_ref[...], preferred_element_type=jnp.float32)
    main = main * s_ref[...] + b_ref[...]
    short = jnp.dot(x_ref[...], wd_ref[...], preferred_element_type=jnp.float32)
    short = short * sd_ref[...] + bd_ref[...]
    o_ref[...] = jnp.maximum(main + short, 0.0).astype(o_ref.dtype)


def _conv3x3_im2col_kernel(x_ref, w_ref, s_ref, b_ref, o_ref, col_ref, *,
                           kh, kw, stride, th, wo):
    """3x3 conv + folded BN + ReLU for one (sample, output-row-tile) grid step.

    x_ref  : (1, s*s, need_h, need_w, C)   phase-decomposed, spatially padded input
             (whole sample resident; the DMA is elided while the sample is unchanged).
    w_ref  : (kh*kw*C, Cout)               tap-major weights.
    col_ref: (th*wo, kh*kw*C) bf16 VMEM scratch -- the im2col buffer.

    Each tap is one contiguous slice copied into its lane band of the im2col
    buffer (the relayout copy is paid once), then a single deep-K matmul runs on
    the MXU; accumulation happens inside the dot, not in a register accumulator.
    """
    c = x_ref.shape[-1]
    rt = pl.program_id(1)
    row_base = pl.multiple_of(rt * th, th)
    for di in range(kh):
        for dj in range(kw):
            p_idx = (di % stride) * stride + (dj % stride)
            r0 = di // stride
            c0 = dj // stride
            tap = di * kw + dj
            patch = x_ref[0, p_idx, pl.ds(row_base + r0, th), pl.ds(c0, wo), :]
            col_ref[:, tap * c:(tap + 1) * c] = patch.reshape(th * wo, c)
    y = jnp.dot(col_ref[...], w_ref[...], preferred_element_type=jnp.float32)
    y = y * s_ref[...] + b_ref[...]
    o_ref[0] = jnp.maximum(y, 0.0).astype(o_ref.dtype)


# ------------------------- tiled pallas_call wrappers ------------------------

def _row_tiled_call(kernel_fn, row_args, bcast_args, *, cout, out_dtype,
                    tm_max=1024):
    """Row(M)-tiled matmul-style call.

    row_args are blocked over M (tile rounded to a multiple of 16 for bf16
    sublane packing, up to tm_max), bcast_args are whole-array blocks reused
    every step.  The M axis is marked 'parallel' for megacore sharding."""
    m = row_args[0].shape[0]
    tm = min(tm_max, _round_up(m, 16))
    mp = _round_up(m, tm)

    args, in_specs = [], []
    for a in row_args:
        if a.shape[0] != mp:
            a = jnp.pad(a, ((0, mp - a.shape[0]), (0, 0)))
        in_specs.append(pl.BlockSpec((tm, a.shape[1]), lambda i: (i, 0)))
        args.append(a)
    for a in bcast_args:
        in_specs.append(pl.BlockSpec(a.shape, lambda i, nd=a.ndim: (0,) * nd))
        args.append(a)

    flops = sum(2 * mp * a.shape[0] * a.shape[1]
                for a in bcast_args if a.ndim == 2 and a.shape[0] > 1)
    bytes_accessed = (sum(int(a.size) * a.dtype.itemsize for a in args)
                      + mp * cout * jnp.dtype(out_dtype).itemsize)

    out = pl.pallas_call(
        kernel_fn,
        out_shape=jax.ShapeDtypeStruct((mp, cout), out_dtype),
        grid=(mp // tm,),
        in_specs=in_specs,
        out_specs=pl.BlockSpec((tm, cout), lambda i: (i, 0)),
        compiler_params=pltpu.CompilerParams(
            dimension_semantics=("parallel",),
            vmem_limit_bytes=_VMEM_LIMIT),
        cost_estimate=pl.CostEstimate(flops=flops, transcendentals=0,
                                      bytes_accessed=bytes_accessed),
    )(*args)
    return out[:m]


def conv3x3_bn_relu(x, w_taps, scale, bias, *, stride, out_dtype=jnp.bfloat16):
    """3x3 conv (padding=1, stride) + folded BN + ReLU.  x: [N,H,W,C] bf16, C%128==0.

    Stride is handled with a space-to-depth phase decomposition (only built when
    stride > 1) so every tap read inside the kernel is a contiguous slice; the
    kernel itself does an in-VMEM im2col and a single K=9*C matmul per tile."""
    n, h, w, c = x.shape
    kh = kw = 3
    pad = 1
    s = stride
    ho = (h + 2 * pad - kh) // s + 1
    wo = (w + 2 * pad - kw) // s + 1
    cout = w_taps.shape[-1]

    # ---- output-row tile size: ~128 im2col rows per tile, sublane-aligned ----
    th = max(1, min(ho, 128 // max(1, wo)))
    while (th * wo) % 8 != 0 and th < ho:
        th += 1
    if (th * wo) % 8 != 0:
        th = ho                      # fall back to full-dim block (always legal)
    ho_p = _round_up(ho, th)
    nrt = ho_p // th
    need_h = ho_p + (kh - 1) // s
    need_w = wo + (kw - 1) // s

    # ---- spatial pad (+ phase decomposition only when stride > 1) ----
    xp = jnp.pad(x, ((0, 0), (pad, pad), (pad, pad), (0, 0)))
    if s == 1:
        ph = jnp.pad(xp, ((0, 0), (0, need_h - xp.shape[1]),
                          (0, need_w - xp.shape[2]), (0, 0)))
        ph_stack = ph.reshape(n, 1, need_h, need_w, c)       # free reshape
    else:
        phases = []
        for p in range(s):
            for q in range(s):
                pp = xp[:, p::s, q::s, :][:, :need_h, :need_w, :]
                pp = jnp.pad(pp, ((0, 0), (0, need_h - pp.shape[1]),
                                  (0, need_w - pp.shape[2]), (0, 0)))
                phases.append(pp)
        ph_stack = jnp.stack(phases, axis=1)   # [N, s*s, need_h, need_w, C]

    kernel = functools.partial(_conv3x3_im2col_kernel,
                               kh=kh, kw=kw, stride=s, th=th, wo=wo)
    flops = 2 * n * ho_p * wo * (kh * kw * c) * cout
    bytes_accessed = (int(ph_stack.size) * ph_stack.dtype.itemsize
                      + int(w_taps.size) * w_taps.dtype.itemsize
                      + n * ho_p * wo * cout * jnp.dtype(out_dtype).itemsize)

    out = pl.pallas_call(
        kernel,
        out_shape=jax.ShapeDtypeStruct((n, ho_p * wo, cout), out_dtype),
        grid=(n, nrt),
        in_specs=[
            # whole sample resident in VMEM; DMA elided while `b` is unchanged
            pl.BlockSpec((1, s * s, need_h, need_w, c),
                         lambda b, r: (b, 0, 0, 0, 0)),
            pl.BlockSpec((kh * kw * c, cout), lambda b, r: (0, 0)),
            pl.BlockSpec((1, cout), lambda b, r: (0, 0)),
            pl.BlockSpec((1, cout), lambda b, r: (0, 0)),
        ],
        out_specs=pl.BlockSpec((1, th * wo, cout), lambda b, r: (b, r, 0)),
        scratch_shapes=[pltpu.VMEM((th * wo, kh * kw * c), jnp.bfloat16)],
        compiler_params=pltpu.CompilerParams(
            dimension_semantics=("parallel", "arbitrary"),
            vmem_limit_bytes=_VMEM_LIMIT),
        cost_estimate=pl.CostEstimate(flops=flops, transcendentals=0,
                                      bytes_accessed=bytes_accessed),
    )(ph_stack, w_taps, scale, bias)
    out = out.reshape(n, ho_p, wo, cout)[:, :ho]
    return out


# ----------------------------- parameter setup ------------------------------

def _kaiming(key, shape, fan_in):
    return jax.random.normal(key, shape, jnp.float32) * math.sqrt(2.0 / fan_in)


def _bn_affine(key, c, c_pad, eps=1e-5):
    """Eval-mode BatchNorm folded into (scale, bias); zero-padded to c_pad lanes."""
    k1, k2 = jax.random.split(key)
    gamma = 1.0 + 0.1 * jax.random.normal(k1, (c,), jnp.float32)
    beta = 0.1 * jax.random.normal(k2, (c,), jnp.float32)
    running_mean = jnp.zeros((c,), jnp.float32)
    running_var = jnp.ones((c,), jnp.float32)
    scale = gamma / jnp.sqrt(running_var + eps)
    bias = beta - running_mean * scale
    scale = jnp.pad(scale, (0, c_pad - c)).reshape(1, c_pad)
    bias = jnp.pad(bias, (0, c_pad - c)).reshape(1, c_pad)
    return scale, bias


def make_bottleneck_params(key, inplanes, planes, stride, expansion=4):
    cout = planes * expansion
    cin_p = _round_up(inplanes, LANE)
    planes_p = _round_up(planes, LANE)
    cout_p = _round_up(cout, LANE)
    keys = jax.random.split(key, 8)

    # conv1: 1x1, inplanes -> planes
    w1 = _kaiming(keys[0], (inplanes, planes), fan_in=inplanes)
    w1 = _pad2(w1, cin_p, planes_p).astype(jnp.bfloat16)
    s1, b1 = _bn_affine(keys[1], planes, planes_p)

    # conv2: 3x3 (stride), planes -> planes  -- stored tap-major [9*Cin, Cout]
    w2 = _kaiming(keys[2], (3, 3, planes, planes), fan_in=9 * planes)
    w2 = jnp.pad(w2, ((0, 0), (0, 0),
                      (0, planes_p - planes), (0, planes_p - planes)))
    w2 = w2.reshape(9 * planes_p, planes_p).astype(jnp.bfloat16)
    s2, b2 = _bn_affine(keys[3], planes, planes_p)

    # conv3: 1x1, planes -> expansion*planes
    w3 = _kaiming(keys[4], (planes, cout), fan_in=planes)
    w3 = _pad2(w3, planes_p, cout_p).astype(jnp.bfloat16)
    s3, b3 = _bn_affine(keys[5], cout, cout_p)

    params = dict(stride=stride, cin=inplanes, cout=cout,
                  cin_p=cin_p, planes_p=planes_p, cout_p=cout_p,
                  w1=w1, s1=s1, b1=b1, w2=w2, s2=s2, b2=b2,
                  w3=w3, s3=s3, b3=b3)
    params["has_down"] = (stride != 1) or (inplanes != cout)
    if params["has_down"]:
        wd = _kaiming(keys[6], (inplanes, cout), fan_in=inplanes)
        params["wd"] = _pad2(wd, cin_p, cout_p).astype(jnp.bfloat16)
        params["sd"], params["bd"] = _bn_affine(keys[7], cout, cout_p)
    return params


# ------------------------------ forward pass --------------------------------

def bottleneck_forward(x_nchw, params, *, keep_padded_nhwc=False):
    p = params
    n, cin, h, w = x_nchw.shape
    assert cin == p["cin"]
    stride = p["stride"]
    cin_p, planes_p, cout_p = p["cin_p"], p["planes_p"], p["cout_p"]

    # NCHW -> NHWC, bf16, channel-pad to a lane-dense multiple of 128.
    x = jnp.transpose(x_nchw, (0, 2, 3, 1)).astype(jnp.bfloat16)
    x = _pad_last(x, cin_p)

    # conv1 (1x1) + bn1 + relu  -- large-M-tile, pipelined, megacore-parallel
    h1 = _row_tiled_call(
        functools.partial(_matmul_bn_kernel, relu=True),
        row_args=[x.reshape(n * h * w, cin_p)],
        bcast_args=[p["w1"], p["s1"], p["b1"]],
        cout=planes_p, out_dtype=jnp.bfloat16)
    h1 = h1.reshape(n, h, w, planes_p)

    # conv2 (3x3, stride, pad=1) + bn2 + relu  -- in-VMEM im2col, grid (N, row tiles)
    h2 = conv3x3_bn_relu(h1, p["w2"], p["s2"], p["b2"], stride=stride)
    ho, wo = h2.shape[1], h2.shape[2]
    h2_flat = h2.reshape(n * ho * wo, planes_p)

    # conv3 (1x1) + bn3 + shortcut + relu, fused into a single kernel (bf16 out)
    if p["has_down"]:
        # strided shortcut rows; small wrapper slice (kept out of the kernel on purpose)
        x_s = x[:, ::stride, ::stride, :][:, :ho, :wo, :]
        out = _row_tiled_call(
            _matmul_bn_down_res_kernel,
            row_args=[h2_flat, x_s.reshape(n * ho * wo, cin_p)],
            bcast_args=[p["w3"], p["s3"], p["b3"],
                        p["wd"], p["sd"], p["bd"]],
            cout=cout_p, out_dtype=jnp.bfloat16)
    else:
        out = _row_tiled_call(
            _matmul_bn_identity_res_kernel,
            row_args=[h2_flat, x.reshape(n * h * w, cin_p)],
            bcast_args=[p["w3"], p["s3"], p["b3"]],
            cout=cout_p, out_dtype=jnp.bfloat16)

    out = out.reshape(n, ho, wo, cout_p)
    if keep_padded_nhwc:
        return out                                   # bf16 NHWC (padded channels)
    # API-compatibility conversion back to the module's NCHW f32 layout.
    out = out[..., :p["cout"]].astype(jnp.float32)
    return jnp.transpose(out, (0, 3, 1, 2))


# ---------------------------------- main -------------------------------------

if __name__ == "__main__":
    key = jax.random.PRNGKey(0)
    k1, k2, k3, k4 = jax.random.split(key, 4)

    # Config A: downsample path (stride=2, inplanes != expansion*planes)
    x_a = jax.random.normal(k1, (2, 64, 32, 32), jnp.float32)
    params_a = make_bottleneck_params(k2, inplanes=64, planes=32, stride=2)
    out_a = jax.block_until_ready(bottleneck_forward(x_a, params_a))
    assert out_a.shape == (2, 128, 16, 16), out_a.shape

    # Config B: identity shortcut (stride=1, inplanes == expansion*planes)
    x_b = jax.random.normal(k3, (2, 128, 16, 16), jnp.float32)
    params_b = make_bottleneck_params(k4, inplanes=128, planes=32, stride=1)
    out_b = jax.block_until_ready(bottleneck_forward(x_b, params_b))
    assert out_b.shape == (2, 128, 16, 16), out_b.shape

    assert bool(jnp.all(jnp.isfinite(out_a))) and bool(jnp.all(jnp.isfinite(out_b)))
    assert bool(jnp.all(out_a >= 0)) and bool(jnp.all(out_b >= 0))   # final ReLU
    print("KERNEL_OK")
</pallas_src>

<mosaic_0001>
module attributes {stable_mosaic.version = 11 : i64} {
  func.func @_matmul_bn_kernel(%arg0: i32, %arg1: memref<1024x128xbf16, #tpu.memory_space<vmem>>, %arg2: memref<128x128xbf16, #tpu.memory_space<vmem>>, %arg3: memref<1x128xf32, #tpu.memory_space<vmem>>, %arg4: memref<1x128xf32, #tpu.memory_space<vmem>>, %arg5: memref<1024x128xbf16, #tpu.memory_space<vmem>>) attributes {dimension_semantics = [#tpu.dimension_semantics<parallel>], iteration_bounds = array<i64: 2>, scalar_prefetch = 0 : i64, scratch_operands = 0 : i64, tpu.core_type = #tpu.core_type<tc>, window_params = [{transform_indices = @transform_0, window_bounds = array<i64: 1024, 128>}, {pipeline_mode = #tpu.pipeline_mode<synchronous>, transform_indices = @transform_1, window_bounds = array<i64: 128, 128>}, {pipeline_mode = #tpu.pipeline_mode<synchronous>, transform_indices = @transform_2, window_bounds = array<i64: 1, 128>}, {pipeline_mode = #tpu.pipeline_mode<synchronous>, transform_indices = @transform_3, window_bounds = array<i64: 1, 128>}, {transform_indices = @transform_4, window_bounds = array<i64: 1024, 128>}]} {
    %c0 = arith.constant 0 : index
    %c0_0 = arith.constant 0 : index
    %0 = vector.load %arg1[%c0, %c0_0] : memref<1024x128xbf16, #tpu.memory_space<vmem>>, vector<1024x128xbf16>
    %c0_1 = arith.constant 0 : index
    %c0_2 = arith.constant 0 : index
    %1 = vector.load %arg2[%c0_1, %c0_2] : memref<128x128xbf16, #tpu.memory_space<vmem>>, vector<128x128xbf16>
    %cst = arith.constant dense<0.000000e+00> : vector<1024x128xf32>
    %2 = tpu.matmul %0, %1, %cst {dimension_numbers = #tpu.dot_dimension_numbers<[1], [0], [0], [1], [0, 0, 1, 1], [], []>} : vector<1024x128xbf16>, vector<128x128xbf16>, vector<1024x128xf32> -> vector<1024x128xf32>
    %c0_3 = arith.constant 0 : index
    %c0_4 = arith.constant 0 : index
    %3 = vector.load %arg3[%c0_3, %c0_4] : memref<1x128xf32, #tpu.memory_space<vmem>>, vector<1x128xf32>
    %4 = vector.broadcast %3 : vector<1x128xf32> to vector<1024x128xf32>
    %5 = arith.mulf %2, %4 : vector<1024x128xf32>
    %c0_5 = arith.constant 0 : index
    %c0_6 = arith.constant 0 : index
    %6 = vector.load %arg4[%c0_5, %c0_6] : memref<1x128xf32, #tpu.memory_space<vmem>>, vector<1x128xf32>
    %7 = vector.broadcast %6 : vector<1x128xf32> to vector<1024x128xf32>
    %8 = arith.addf %5, %7 : vector<1024x128xf32>
    %cst_7 = arith.constant 0.000000e+00 : f32
    %9 = vector.broadcast %cst_7 : f32 to vector<1024x128xf32>
    %10 = arith.maximumf %8, %9 : vector<1024x128xf32>
    %11 = arith.truncf %10 : vector<1024x128xf32> to vector<1024x128xbf16>
    %c0_8 = arith.constant 0 : index
    %c0_9 = arith.constant 0 : index
    %12 = vector.load %arg5[%c0_8, %c0_9] : memref<1024x128xbf16, #tpu.memory_space<vmem>>, vector<1024x128xbf16>
    tpu.vector_store %arg5[%c0_8, %c0_9], %11 {strides = array<i32>} : memref<1024x128xbf16, #tpu.memory_space<vmem>>, vector<1024x128xbf16>,
    return
  }
  func.func @transform_0(%arg0: i32) -> (i32, i32) {
    %c0_i32 = arith.constant 0 : i32
    %c0_i32_0 = arith.constant 0 : i32
    return %arg0, %c0_i32 : i32, i32
  }
  func.func @transform_1(%arg0: i32) -> (i32, i32) {
    %c0_i32 = arith.constant 0 : i32
    %c0_i32_0 = arith.constant 0 : i32
    %c0_i32_1 = arith.constant 0 : i32
    return %c0_i32, %c0_i32_0 : i32, i32
  }
  func.func @transform_2(%arg0: i32) -> (i32, i32) {
    %c0_i32 = arith.constant 0 : i32
    %c0_i32_0 = arith.constant 0 : i32
    %c0_i32_1 = arith.constant 0 : i32
    return %c0_i32, %c0_i32_0 : i32, i32
  }
  func.func @transform_3(%arg0: i32) -> (i32, i32) {
    %c0_i32 = arith.constant 0 : i32
    %c0_i32_0 = arith.constant 0 : i32
    %c0_i32_1 = arith.constant 0 : i32
    return %c0_i32, %c0_i32_0 : i32, i32
  }
  func.func @transform_4(%arg0: i32) -> (i32, i32) {
    %c0_i32 = arith.constant 0 : i32
    %c0_i32_0 = arith.constant 0 : i32
    return %arg0, %c0_i32 : i32, i32
  }
}

</mosaic_0001>

<llo_original>
// kernel: tpu_custom_call.1
$region0: #{tpu_custom_call.1}
  #allocation0 [shape = 'u32[]', space=smem, size = 0x4, offset = 0x4, fixed_abs, tag = 'smem constant byte address 0x4 - core index']
  #allocation1 [shape = 'u32[144,128]{1,0:T(1,128)}', space=vmem, size = 0x12000, scoped, tag = 'internal scratch']
  %s0 = inlined_call_operand.hbm [shape: bf16[2048,128], index: 0, kind: input, shape index: {}]
  %s1 = inlined_call_operand.hbm [shape: bf16[128,128], index: 1, kind: input, shape index: {}]
  %s2 = inlined_call_operand.vmem [shape: f32[1,128], index: 2, kind: input, shape index: {}]
  %s3 = inlined_call_operand.vmem [shape: f32[1,128], index: 3, kind: input, shape index: {}]
  %s4 = inlined_call_operand.hbm [shape: bf16[2048,128], index: 4, kind: output, shape index: {}]
  %s5 = sld [smem:[#allocation0]]
  $region57: #{tpu_custom_call.1} parent=0
    _
  %s7 = ssub.s32 1, %s5
  %s8 = scalar_select 0, %s7, %s5
  $region1: #{tpu_custom_call.1} parent=0
    #allocation2 [shape = 'u8[524288]{0}', space=vmem, size = 0x80000, scoped, tag = 'input window, operand 0']
    #allocation3 [shape = 's32[2]{0}', space=sflag, size = 0x8, scoped, tag = 'scoped memory for tpu_custom_call.1']
    #allocation4 [shape = 's32[2]{0}', space=sflag, size = 0x8, scoped, tag = 'scoped memory for tpu_custom_call.1']
    #allocation5 [shape = 'u8[32768]{0}', space=vmem, size = 0x8000, scoped, tag = 'input window, operand 1, single buffered']
    #allocation6 [shape = 's32[1]{0}', space=sflag, size = 0x4, scoped, tag = 'scoped memory for tpu_custom_call.1']
    #allocation7 [shape = 'u8[524288]{0}', space=vmem, size = 0x80000, scoped, tag = 'output window, operand 0']
    %9 = vsyncpa [#allocation3], 0
    %s10 = scalar_lea.sflag [#allocation3], 1
    %11 = vsyncpa %s10, 0
    %12 = vsyncpa [#allocation6], 0
    %13 = vsyncpa [#allocation4], 0
    %s14 = scalar_lea.sflag [#allocation4], 1
    %15 = vsyncpa %s14, 0
    loop: start=0, step=1, limit=4
    $region2: #{tpu_custom_call.1} parent=1 // loop_pre_header
      _
    $region3: #{tpu_custom_call.1} parent=1 // loop_header
      %s17 = sphi 0, %s21
      %p18 = scmp.ge.s32.totalorder %s17, 4
      %s27 = sphi 0, %s29
      %s30 = sphi 0, %s27
      %s31 = sphi 0, %s30
      %s47 = sphi 0, %s31
      %s51 = sphi 0, %s51
      %s53 = sphi 0, %s51
      %s54 = sphi 0, %s53
      %s68 = sphi 0, %s54
      %s72 = sphi 0, %s72
      %s74 = sphi 0, %s72
      %s75 = sphi 0, %s74
      %s89 = sphi 0, %s75
      %s93 = sphi 0, %s93
      %s95 = sphi 0, %s93
      %s96 = sphi 0, %s95
      %s110 = sphi 0, %s96
      %s116 = sphi 0, %s118
      %s119 = sphi 0, %s116
      %s120 = sphi 0, %s119
      %s136 = sphi 0, %s120
    $region4: #{tpu_custom_call.1} parent=1 // loop_header_branch
      %20 = sbr.rel (%p18) target = $region8
    $region5: #{tpu_custom_call.1} parent=1 // loop_body
      %s22 = ssub.s32 %s17, 1
      %s23 = ssub.s32 %s17, 2
      %s24 = sadd.s32 %s17, 1
      %s25 = ssub.s32 %s17, %s24
      %p26 = scmp.eq.s32.totalorder %s25, 0
      %s28 = sadd.s32 %s27, 1
      %s29 = scalar_select %p26, %s27, %s28
      %p32 = pneg %p26
      %p33 = scmp.eq.s32.totalorder %s17, 1
      %p34 = por %p32, %p33
      %p35 = scmp.ne.s32.totalorder %s27, %s30
      %p36 = scmp.eq.s32.totalorder %s17, 0
      %p37 = por %p35, %p36
      %p38 = scmp.ne.s32.totalorder %s27, %s30
      %p39 = scmp.eq.s32.totalorder %s22, 1
      %p40 = por %p38, %p39
      %p41 = scmp.ne.s32.totalorder %s30, %s31
      %p42 = scmp.eq.s32.totalorder %s22, 0
      %p43 = por %p41, %p42
      %p44 = scmp.ne.s32.totalorder %s30, %s31
      %p45 = scmp.eq.s32.totalorder %s23, 1
      %p46 = por %p44, %p45
      %p48 = scmp.ne.s32.totalorder %s31, %s47
      %p49 = scmp.eq.s32.totalorder %s23, 0
      %p50 = por %p48, %p49
      %s52 = sadd.s32 %s51, 1
      %p55 = scmp.eq.s32.totalorder %s17, 1
      %p56 = scmp.ne.s32.totalorder %s51, %s53
      %p57 = scmp.eq.s32.totalorder %s17, 0
      %p58 = por %p56, %p57
      %p59 = scmp.ne.s32.totalorder %s51, %s53
      %p60 = scmp.eq.s32.totalorder %s22, 1
      %p61 = por %p59, %p60
      %p62 = scmp.ne.s32.totalorder %s53, %s54
      %p63 = scmp.eq.s32.totalorder %s22, 0
      %p64 = por %p62, %p63
      %p65 = scmp.ne.s32.totalorder %s53, %s54
      %p66 = scmp.eq.s32.totalorder %s23, 1
      %p67 = por %p65, %p66
      %p69 = scmp.ne.s32.totalorder %s54, %s68
      %p70 = scmp.eq.s32.totalorder %s23, 0
      %p71 = por %p69, %p70
      %s73 = sadd.s32 %s72, 1
      %p76 = scmp.eq.s32.totalorder %s17, 1
      %p77 = scmp.ne.s32.totalorder %s72, %s74
      %p78 = scmp.eq.s32.totalorder %s17, 0
      %p79 = por %p77, %p78
      %p80 = scmp.ne.s32.totalorder %s72, %s74
      %p81 = scmp.eq.s32.totalorder %s22, 1
      %p82 = por %p80, %p81
      %p83 = scmp.ne.s32.totalorder %s74, %s75
      %p84 = scmp.eq.s32.totalorder %s22, 0
      %p85 = por %p83, %p84
      %p86 = scmp.ne.s32.totalorder %s74, %s75
      %p87 = scmp.eq.s32.totalorder %s23, 1
      %p88 = por %p86, %p87
      %p90 = scmp.ne.s32.totalorder %s75, %s89
      %p91 = scmp.eq.s32.totalorder %s23, 0
      %p92 = por %p90, %p91
      %s94 = sadd.s32 %s93, 1
      %p97 = scmp.eq.s32.totalorder %s17, 1
      %p98 = scmp.ne.s32.totalorder %s93, %s95
      %p99 = scmp.eq.s32.totalorder %s17, 0
      %p100 = por %p98, %p99
      %p101 = scmp.ne.s32.totalorder %s93, %s95
      %p102 = scmp.eq.s32.totalorder %s22, 1
      %p103 = por %p101, %p102
      %p104 = scmp.ne.s32.totalorder %s95, %s96
      %p105 = scmp.eq.s32.totalorder %s22, 0
      %p106 = por %p104, %p105
      %p107 = scmp.ne.s32.totalorder %s95, %s96
      %p108 = scmp.eq.s32.totalorder %s23, 1
      %p109 = por %p107, %p108
      %p111 = scmp.ne.s32.totalorder %s96, %s110
      %p112 = scmp.eq.s32.totalorder %s23, 0
      %p113 = por %p111, %p112
      %s114 = ssub.s32 %s17, %s24
      %p115 = scmp.eq.s32.totalorder %s114, 0
      %s117 = sadd.s32 %s116, 1
      %s118 = scalar_select %p115, %s116, %s117
      %p121 = pneg %p115
      %p122 = scmp.eq.s32.totalorder %s17, 1
      %p123 = por %p121, %p122
      %p124 = scmp.ne.s32.totalorder %s116, %s119
      %p125 = scmp.eq.s32.totalorder %s17, 0
      %p126 = por %p124, %p125
      %p127 = scmp.ne.s32.totalorder %s116, %s119
      %p128 = scmp.eq.s32.totalorder %s22, 1
      %p129 = por %p127, %p128
      %p130 = scmp.ne.s32.totalorder %s119, %s120
      %p131 = scmp.eq.s32.totalorder %s22, 0
      %p132 = por %p130, %p131
      %p133 = scmp.ne.s32.totalorder %s119, %s120
      %p134 = scmp.eq.s32.totalorder %s23, 1
      %p135 = por %p133, %p134
      %p137 = scmp.ne.s32.totalorder %s120, %s136
      %p138 = scmp.eq.s32.totalorder %s23, 0
      %p139 = por %p137, %p138
      %p140 = scmp.le.s32.totalorder 1, %s17
      %p141 = scmp.lt.s32.totalorder %s17, 3
      %p142 = pnand %p140, %p141
      %p143 = pneg %p142
      // Predicated region
      $region9: #{tpu_custom_call.1} parent=5 // pred_check
        _
      $region10: #{tpu_custom_call.1} parent=5 // pred_check_branch
        %145 = sbr.rel (%p142) target = $region12
      $region11: #{tpu_custom_call.1} parent=5 // pred_region
        %s146 = ssub.s32 %s17, 1
        // Predicated region
        $region13: #{tpu_custom_call.1} parent=11 // pred_check
          %p147 = pneg %p64
        $region14: #{tpu_custom_call.1} parent=11 // pred_check_branch
          %149 = sbr.rel (%p147) target = $region16
        $region15: #{tpu_custom_call.1} parent=11 // pred_region
          %s151 = ssub.s32 1024, 1024
          %152 = vsyncadd [#allocation6], %s151
          %s153 = sshll.u32 [#allocation5], 4
          %s154 = int_to_ptr.vmem [resolvable:$true] %s153
          %159 = dma.hbm_to_vmem [thread:$0]  %s1, 1024, %s154, [#allocation6], 64, 64, 4
        $region16: #{tpu_custom_call.1} parent=11 // pred_fallthru
          _
        // Predicated region
        $region17: #{tpu_custom_call.1} parent=11 // pred_check
          %p160 = pneg %p85
        $region18: #{tpu_custom_call.1} parent=11 // pred_check_branch
          %162 = sbr.rel (%p160) target = $region20
        $region19: #{tpu_custom_call.1} parent=11 // pred_region
          _
        $region20: #{tpu_custom_call.1} parent=11 // pred_fallthru
          _
        // Predicated region
        $region21: #{tpu_custom_call.1} parent=11 // pred_check
          %p163 = pneg %p106
        $region22: #{tpu_custom_call.1} parent=11 // pred_check_branch
          %165 = sbr.rel (%p163) target = $region24
        $region23: #{tpu_custom_call.1} parent=11 // pred_region
          _
        $region24: #{tpu_custom_call.1} parent=11 // pred_fallthru
          _
      $region12: #{tpu_custom_call.1} parent=5 // pred_fallthru
        _
      %p166 = scmp.lt.s32.totalorder %s17, 2
      // Predicated region
      $region25: #{tpu_custom_call.1} parent=5 // pred_check
        %p167 = pneg %p166
      $region26: #{tpu_custom_call.1} parent=5 // pred_check_branch
        %169 = sbr.rel (%p167) target = $region28
      $region27: #{tpu_custom_call.1} parent=5 // pred_region
        // Predicated region
        $region29: #{tpu_custom_call.1} parent=27 // pred_check
          %p170 = pneg %p37
        $region30: #{tpu_custom_call.1} parent=27 // pred_check_branch
          %172 = sbr.rel (%p170) target = $region32
        $region31: #{tpu_custom_call.1} parent=27 // pred_region
          %s173 = sand.u32 %s27, 1
          %s174 = scalar_lea.sflag [#allocation3], %s173
          %s175 = sand.u32 %s27, 1
          %s176 = smul.addr %s175, 512
          %s177 = scalar_lea.vmem [#allocation2], %s176
          %s178 = smul.u32 128, %s17
          %s180 = ssub.s32 8192, 8192
          %181 = vsyncadd %s174, %s180
          %s182 = smul.addr %s178, 64
          %s183 = scalar_lea.hbm %s0, %s182
          %s184 = sshll.u32 %s177, 4
          %s185 = int_to_ptr.vmem [resolvable:$true] %s184
          %190 = dma.hbm_to_vmem [thread:$0]  %s183, 8192, %s185, %s174, 64, 64, 4
        $region32: #{tpu_custom_call.1} parent=27 // pred_fallthru
          _
      $region28: #{tpu_custom_call.1} parent=5 // pred_fallthru
        _
      %p191 = scmp.le.s32.totalorder 1, %s17
      %p192 = scmp.lt.s32.totalorder %s17, 3
      %p193 = pnand %p191, %p192
      %p194 = pneg %p193
      // Predicated region
      $region33: #{tpu_custom_call.1} parent=5 // pred_check
        _
      $region34: #{tpu_custom_call.1} parent=5 // pred_check_branch
        %196 = sbr.rel (%p193) target = $region36
      $region35: #{tpu_custom_call.1} parent=5 // pred_region
        %s197 = ssub.s32 %s17, 1
        %s198 = sand.u32 %s30, 1
        %s199 = scalar_lea.sflag [#allocation3], %s198
        %s200 = sand.u32 %s30, 1
        %s201 = smul.addr %s200, 512
        %s202 = scalar_lea.vmem [#allocation2], %s201
        // Predicated region
        $region37: #{tpu_custom_call.1} parent=35 // pred_check
          %p203 = pneg %p43
        $region38: #{tpu_custom_call.1} parent=35 // pred_check_branch
          %205 = sbr.rel (%p203) target = $region40
        $region39: #{tpu_custom_call.1} parent=35 // pred_region
          %206 = dma.done %s199, 8192
        $region40: #{tpu_custom_call.1} parent=35 // pred_fallthru
          _
        // Predicated region
        $region41: #{tpu_custom_call.1} parent=35 // pred_check
          %p207 = pneg %p64
        $region42: #{tpu_custom_call.1} parent=35 // pred_check_branch
          %209 = sbr.rel (%p207) target = $region44
        $region43: #{tpu_custom_call.1} parent=35 // pred_region
          %210 = dma.done [#allocation6], 1024
        $region44: #{tpu_custom_call.1} parent=35 // pred_fallthru
          _
        %s211 = sand.u32 %s30, 1
        %s212 = scalar_lea.sflag [#allocation3], %s211
        %s213 = sand.u32 %s30, 1
        %s214 = smul.addr %s213, 512
        %s215 = scalar_lea.vmem [#allocation2], %s214
        %p216 = pneg %p43
        %p217 = pneg %p40
        %p218 = pneg %p64
        %p219 = pneg %p61
        %p220 = pneg %p85
        %p221 = pneg %p82
        %p222 = pneg %p106
        %p223 = pneg %p103
        %p224 = pneg %p132
        %p225 = pneg %p129
        %s226 = sand.u32 %s119, 1
        %s227 = scalar_lea.sflag [#allocation4], %s226
        %s228 = sand.u32 %s119, 1
        %s229 = smul.addr %s228, 512
        %s230 = scalar_lea.vmem [#allocation7], %s229
        %s231 = smul.u32 128, %s22
        %s232 = smul.u32 128, %s22
        %v234 = vld [vmem:[%s202] sm:$0xf]
        %v235 = vld [vmem:[%s202 + $0x4] sm:$0xf]
        %v236 = vld [vmem:[%s202 + $0x8] sm:$0xf]
        %v237 = vld [vmem:[%s202 + $0xc] sm:$0xf]
        %v238 = vld [vmem:[%s202 + $0x10] sm:$0xf]
        %v239 = vld [vmem:[%s202 + $0x14] sm:$0xf]
        %v240 = vld [vmem:[%s202 + $0x18] sm:$0xf]
        %v241 = vld [vmem:[%s202 + $0x1c] sm:$0xf]
        %v242 = vld [vmem:[%s202 + $0x20] sm:$0xf]
        %v243 = vld [vmem:[%s202 + $0x24] sm:$0xf]
        %v244 = vld [vmem:[%s202 + $0x28] sm:$0xf]
        %v245 = vld [vmem:[%s202 + $0x2c] sm:$0xf]
        %v246 = vld [vmem:[%s202 + $0x30] sm:$0xf]
        %v247 = vld [vmem:[%s202 + $0x34] sm:$0xf]
        %v248 = vld [vmem:[%s202 + $0x38] sm:$0xf]
        %v249 = vld [vmem:[%s202 + $0x3c] sm:$0xf]
        %v250 = vld [vmem:[%s202 + $0x40] sm:$0xf]
        %v251 = vld [vmem:[%s202 + $0x44] sm:$0xf]
        %v252 = vld [vmem:[%s202 + $0x48] sm:$0xf]
        %v253 = vld [vmem:[%s202 + $0x4c] sm:$0xf]
        %v254 = vld [vmem:[%s202 + $0x50] sm:$0xf]
        %v255 = vld [vmem:[%s202 + $0x54] sm:$0xf]
        %v256 = vld [vmem:[%s202 + $0x58] sm:$0xf]
        %v257 = vld [vmem:[%s202 + $0x5c] sm:$0xf]
        %v258 = vld [vmem:[%s202 + $0x60] sm:$0xf]
        %v259 = vld [vmem:[%s202 + $0x64] sm:$0xf]
        %v260 = vld [vmem:[%s202 + $0x68] sm:$0xf]
        %v261 = vld [vmem:[%s202 + $0x6c] sm:$0xf]
        %v262 = vld [vmem:[%s202 + $0x70] sm:$0xf]
        %v263 = vld [vmem:[%s202 + $0x74] sm:$0xf]
        %v264 = vld [vmem:[%s202 + $0x78] sm:$0xf]
        %v265 = vld [vmem:[%s202 + $0x7c] sm:$0xf]
        %v266 = vld [vmem:[%s202 + $0x80] sm:$0xf]
        %v267 = vld [vmem:[%s202 + $0x84] sm:$0xf]
        %v268 = vld [vmem:[%s202 + $0x88] sm:$0xf]
        %v269 = vld [vmem:[%s202 + $0x8c] sm:$0xf]
        %v270 = vld [vmem:[%s202 + $0x90] sm:$0xf]
        %v271 = vld [vmem:[%s202 + $0x94] sm:$0xf]
        %v272 = vld [vmem:[%s202 + $0x98] sm:$0xf]
        %v273 = vld [vmem:[%s202 + $0x9c] sm:$0xf]
        %v274 = vld [vmem:[%s202 + $0xa0] sm:$0xf]
        %v275 = vld [vmem:[%s202 + $0xa4] sm:$0xf]
        %v276 = vld [vmem:[%s202 + $0xa8] sm:$0xf]
        %v277 = vld [vmem:[%s202 + $0xac] sm:$0xf]
        %v278 = vld [vmem:[%s202 + $0xb0] sm:$0xf]
        %v279 = vld [vmem:[%s202 + $0xb4] sm:$0xf]
        %v280 = vld [vmem:[%s202 + $0xb8] sm:$0xf]
        %v281 = vld [vmem:[%s202 + $0xbc] sm:$0xf]
        %v282 = vld [vmem:[%s202 + $0xc0] sm:$0xf]
        %v283 = vld [vmem:[%s202 + $0xc4] sm:$0xf]
        %v284 = vld [vmem:[%s202 + $0xc8] sm:$0xf]
        %v285 = vld [vmem:[%s202 + $0xcc] sm:$0xf]
        %v286 = vld [vmem:[%s202 + $0xd0] sm:$0xf]
        %v287 = vld [vmem:[%s202 + $0xd4] sm:$0xf]
        %v288 = vld [vmem:[%s202 + $0xd8] sm:$0xf]
        %v289 = vld [vmem:[%s202 + $0xdc] sm:$0xf]
        %v290 = vld [vmem:[%s202 + $0xe0] sm:$0xf]
        %v291 = vld [vmem:[%s202 + $0xe4] sm:$0xf]
        %v292 = vld [vmem:[%s202 + $0xe8] sm:$0xf]
        %v293 = vld [vmem:[%s202 + $0xec] sm:$0xf]
        %v294 = vld [vmem:[%s202 + $0xf0] sm:$0xf]
        %v295 = vld [vmem:[%s202 + $0xf4] sm:$0xf]
        %v296 = vld [vmem:[%s202 + $0xf8] sm:$0xf]
        %v297 = vld [vmem:[%s202 + $0xfc] sm:$0xf]
        %v298 = vld [vmem:[%s202 + $0x100] sm:$0xf]
        %v299 = vld [vmem:[%s202 + $0x104] sm:$0xf]
        %v300 = vld [vmem:[%s202 + $0x108] sm:$0xf]
        %v301 = vld [vmem:[%s202 + $0x10c] sm:$0xf]
        %v302 = vld [vmem:[%s202 + $0x110] sm:$0xf]
        %v303 = vld [vmem:[%s202 + $0x114] sm:$0xf]
        %v304 = vld [vmem:[%s202 + $0x118] sm:$0xf]
        %v305 = vld [vmem:[%s202 + $0x11c] sm:$0xf]
        %v306 = vld [vmem:[%s202 + $0x120] sm:$0xf]
        %v307 = vld [vmem:[%s202 + $0x124] sm:$0xf]
        %v308 = vld [vmem:[%s202 + $0x128] sm:$0xf]
        %v309 = vld [vmem:[%s202 + $0x12c] sm:$0xf]
        %v310 = vld [vmem:[%s202 + $0x130] sm:$0xf]
        %v311 = vld [vmem:[%s202 + $0x134] sm:$0xf]
        %v312 = vld [vmem:[%s202 + $0x138] sm:$0xf]
        %v313 = vld [vmem:[%s202 + $0x13c] sm:$0xf]
        %v314 = vld [vmem:[%s202 + $0x140] sm:$0xf]
        %v315 = vld [vmem:[%s202 + $0x144] sm:$0xf]
        %v316 = vld [vmem:[%s202 + $0x148] sm:$0xf]
        %v317 = vld [vmem:[%s202 + $0x14c] sm:$0xf]
        %v318 = vld [vmem:[%s202 + $0x150] sm:$0xf]
        %v319 = vld [vmem:[%s202 + $0x154] sm:$0xf]
        %v320 = vld [vmem:[%s202 + $0x158] sm:$0xf]
        %v321 = vld [vmem:[%s202 + $0x15c] sm:$0xf]
        %v322 = vld [vmem:[%s202 + $0x160] sm:$0xf]
        %v323 = vld [vmem:[%s202 + $0x164] sm:$0xf]
        %v324 = vld [vmem:[%s202 + $0x168] sm:$0xf]
        %v325 = vld [vmem:[%s202 + $0x16c] sm:$0xf]
        %v326 = vld [vmem:[%s202 + $0x170] sm:$0xf]
        %v327 = vld [vmem:[%s202 + $0x174] sm:$0xf]
        %v328 = vld [vmem:[%s202 + $0x178] sm:$0xf]
        %v329 = vld [vmem:[%s202 + $0x17c] sm:$0xf]
        %v330 = vld [vmem:[%s202 + $0x180] sm:$0xf]
        %v331 = vld [vmem:[%s202 + $0x184] sm:$0xf]
        %v332 = vld [vmem:[%s202 + $0x188] sm:$0xf]
        %v333 = vld [vmem:[%s202 + $0x18c] sm:$0xf]
        %v334 = vld [vmem:[%s202 + $0x190] sm:$0xf]
        %v335 = vld [vmem:[%s202 + $0x194] sm:$0xf]
        %v336 = vld [vmem:[%s202 + $0x198] sm:$0xf]
        %v337 = vld [vmem:[%s202 + $0x19c] sm:$0xf]
        %v338 = vld [vmem:[%s202 + $0x1a0] sm:$0xf]
        %v339 = vld [vmem:[%s202 + $0x1a4] sm:$0xf]
        %v340 = vld [vmem:[%s202 + $0x1a8] sm:$0xf]
        %v341 = vld [vmem:[%s202 + $0x1ac] sm:$0xf]
        %v342 = vld [vmem:[%s202 + $0x1b0] sm:$0xf]
        %v343 = vld [vmem:[%s202 + $0x1b4] sm:$0xf]
        %v344 = vld [vmem:[%s202 + $0x1b8] sm:$0xf]
        %v345 = vld [vmem:[%s202 + $0x1bc] sm:$0xf]
        %v346 = vld [vmem:[%s202 + $0x1c0] sm:$0xf]
        %v347 = vld [vmem:[%s202 + $0x1c4] sm:$0xf]
        %v348 = vld [vmem:[%s202 + $0x1c8] sm:$0xf]
        %v349 = vld [vmem:[%s202 + $0x1cc] sm:$0xf]
        %v350 = vld [vmem:[%s202 + $0x1d0] sm:$0xf]
        %v351 = vld [vmem:[%s202 + $0x1d4] sm:$0xf]
        %v352 = vld [vmem:[%s202 + $0x1d8] sm:$0xf]
        %v353 = vld [vmem:[%s202 + $0x1dc] sm:$0xf]
        %v354 = vld [vmem:[%s202 + $0x1e0] sm:$0xf]
        %v355 = vld [vmem:[%s202 + $0x1e4] sm:$0xf]
        %v356 = vld [vmem:[%s202 + $0x1e8] sm:$0xf]
        %v357 = vld [vmem:[%s202 + $0x1ec] sm:$0xf]
        %v358 = vld [vmem:[%s202 + $0x1f0] sm:$0xf]
        %v359 = vld [vmem:[%s202 + $0x1f4] sm:$0xf]
        %v360 = vld [vmem:[%s202 + $0x1f8] sm:$0xf]
        %v361 = vld [vmem:[%s202 + $0x1fc] sm:$0xf]
        %v362 = vld [vmem:[#allocation5] sm:$0xf]
        %v363 = vld [vmem:[#allocation5 + $0x4] sm:$0xf]
        %v364 = vld [vmem:[#allocation5 + $0x8] sm:$0xf]
        %v365 = vld [vmem:[#allocation5 + $0xc] sm:$0xf]
        %v366 = vld [vmem:[#allocation5 + $0x10] sm:$0xf]
        %v367 = vld [vmem:[#allocation5 + $0x14] sm:$0xf]
        %v368 = vld [vmem:[#allocation5 + $0x18] sm:$0xf]
        %v369 = vld [vmem:[#allocation5 + $0x1c] sm:$0xf]
        %v370 = vld [vmem:[#allocation5 + $0x20] sm:$0xf]
        %v371 = vld [vmem:[#allocation5 + $0x24] sm:$0xf]
        %v372 = vld [vmem:[#allocation5 + $0x28] sm:$0xf]
        %v373 = vld [vmem:[#allocation5 + $0x2c] sm:$0xf]
        %v374 = vld [vmem:[#allocation5 + $0x30] sm:$0xf]
        %v375 = vld [vmem:[#allocation5 + $0x34] sm:$0xf]
        %v376 = vld [vmem:[#allocation5 + $0x38] sm:$0xf]
        %v377 = vld [vmem:[#allocation5 + $0x3c] sm:$0xf]
        %v506 = vunpack.c.l.b16 %v234
        %v507 = vunpack.c.l.b16 %v235
        %v508 = vunpack.c.l.b16 %v236
        %v509 = vunpack.c.l.b16 %v237
        %v510 = vunpack.c.l.b16 %v238
        %v511 = vunpack.c.l.b16 %v239
        %v512 = vunpack.c.l.b16 %v240
        %v513 = vunpack.c.l.b16 %v241
        %v514 = vunpack.c.l.b16 %v242
        %v515 = vunpack.c.l.b16 %v243
        %v516 = vunpack.c.l.b16 %v244
        %v517 = vunpack.c.l.b16 %v245
        %v518 = vunpack.c.l.b16 %v246
        %v519 = vunpack.c.l.b16 %v247
        %v520 = vunpack.c.l.b16 %v248
        %v521 = vunpack.c.l.b16 %v249
        %v522 = vunpack.c.l.b16 %v250
        %v523 = vunpack.c.l.b16 %v251
        %v524 = vunpack.c.l.b16 %v252
        %v525 = vunpack.c.l.b16 %v253
        %v526 = vunpack.c.l.b16 %v254
        %v527 = vunpack.c.l.b16 %v255
        %v528 = vunpack.c.l.b16 %v256
        %v529 = vunpack.c.l.b16 %v257
        %v530 = vunpack.c.l.b16 %v258
        %v531 = vunpack.c.l.b16 %v259
        %v532 = vunpack.c.l.b16 %v260
        %v533 = vunpack.c.l.b16 %v261
        %v534 = vunpack.c.l.b16 %v262
        %v535 = vunpack.c.l.b16 %v263
        %v536 = vunpack.c.l.b16 %v264
        %v537 = vunpack.c.l.b16 %v265
        %v538 = vunpack.c.l.b16 %v266
        %v539 = vunpack.c.l.b16 %v267
        %v540 = vunpack.c.l.b16 %v268
        %v541 = vunpack.c.l.b16 %v269
        %v542 = vunpack.c.l.b16 %v270
        %v543 = vunpack.c.l.b16 %v271
        %v544 = vunpack.c.l.b16 %v272
        %v545 = vunpack.c.l.b16 %v273
        %v546 = vunpack.c.l.b16 %v274
        %v547 = vunpack.c.l.b16 %v275
        %v548 = vunpack.c.l.b16 %v276
        %v549 = vunpack.c.l.b16 %v277
        %v550 = vunpack.c.l.b16 %v278
        %v551 = vunpack.c.l.b16 %v279
        %v552 = vunpack.c.l.b16 %v280
        %v553 = vunpack.c.l.b16 %v281
        %v554 = vunpack.c.l.b16 %v282
        %v555 = vunpack.c.l.b16 %v283
        %v556 = vunpack.c.l.b16 %v284
        %v557 = vunpack.c.l.b16 %v285
        %v558 = vunpack.c.l.b16 %v286
        %v559 = vunpack.c.l.b16 %v287
        %v560 = vunpack.c.l.b16 %v288
        %v561 = vunpack.c.l.b16 %v289
        %v562 = vunpack.c.l.b16 %v290
        %v563 = vunpack.c.l.b16 %v291
        %v564 = vunpack.c.l.b16 %v292
        %v565 = vunpack.c.l.b16 %v293
        %v566 = vunpack.c.l.b16 %v294
        %v567 = vunpack.c.l.b16 %v295
        %v568 = vunpack.c.l.b16 %v296
        %v569 = vunpack.c.l.b16 %v297
        %v570 = vunpack.c.l.b16 %v298
        %v571 = vunpack.c.l.b16 %v299
        %v572 = vunpack.c.l.b16 %v300
        %v573 = vunpack.c.l.b16 %v301
        %v574 = vunpack.c.l.b16 %v302
        %v575 = vunpack.c.l.b16 %v303
        %v576 = vunpack.c.l.b16 %v304
        %v577 = vunpack.c.l.b16 %v305
        %v578 = vunpack.c.l.b16 %v306
        %v579 = vunpack.c.l.b16 %v307
        %v580 = vunpack.c.l.b16 %v308
        %v581 = vunpack.c.l.b16 %v309
        %v582 = vunpack.c.l.b16 %v310
        %v583 = vunpack.c.l.b16 %v311
        %v584 = vunpack.c.l.b16 %v312
        %v585 = vunpack.c.l.b16 %v313
        %v586 = vunpack.c.l.b16 %v314
        %v587 = vunpack.c.l.b16 %v315
        %v588 = vunpack.c.l.b16 %v316
        %v589 = vunpack.c.l.b16 %v317
        %v590 = vunpack.c.l.b16 %v318
        %v591 = vunpack.c.l.b16 %v319
        %v592 = vunpack.c.l.b16 %v320
        %v593 = vunpack.c.l.b16 %v321
        %v594 = vunpack.c.l.b16 %v322
        %v595 = vunpack.c.l.b16 %v323
        %v596 = vunpack.c.l.b16 %v324
        %v597 = vunpack.c.l.b16 %v325
        %v598 = vunpack.c.l.b16 %v326
        %v599 = vunpack.c.l.b16 %v327
        %v600 = vunpack.c.l.b16 %v328
        %v601 = vunpack.c.l.b16 %v329
        %v602 = vunpack.c.l.b16 %v330
        %v603 = vunpack.c.l.b16 %v331
        %v604 = vunpack.c.l.b16 %v332
        %v605 = vunpack.c.l.b16 %v333
        %v606 = vunpack.c.l.b16 %v334
        %v607 = vunpack.c.l.b16 %v335
        %v608 = vunpack.c.l.b16 %v336
        %v609 = vunpack.c.l.b16 %v337
        %v610 = vunpack.c.l.b16 %v338
        %v611 = vunpack.c.l.b16 %v339
        %v612 = vunpack.c.l.b16 %v340
        %v613 = vunpack.c.l.b16 %v341
        %v614 = vunpack.c.l.b16 %v342
        %v615 = vunpack.c.l.b16 %v343
        %v616 = vunpack.c.l.b16 %v344
        %v617 = vunpack.c.l.b16 %v345
        %v618 = vunpack.c.l.b16 %v346
        %v619 = vunpack.c.l.b16 %v347
        %v620 = vunpack.c.l.b16 %v348
        %v621 = vunpack.c.l.b16 %v349
        %v622 = vunpack.c.l.b16 %v350
        %v623 = vunpack.c.l.b16 %v351
        %v624 = vunpack.c.l.b16 %v352
        %v625 = vunpack.c.l.b16 %v353
        %v626 = vunpack.c.l.b16 %v354
        %v627 = vunpack.c.l.b16 %v355
        %v628 = vunpack.c.l.b16 %v356
        %v629 = vunpack.c.l.b16 %v357
        %v630 = vunpack.c.l.b16 %v358
        %v631 = vunpack.c.l.b16 %v359
        %v632 = vunpack.c.l.b16 %v360
        %v633 = vunpack.c.l.b16 %v361
        %v634 = vpack.c.b16 %v507, %v506
        %v635 = vpack.c.b16 %v509, %v508
        %v636 = vpack.c.b16 %v511, %v510
        %v637 = vpack.c.b16 %v513, %v512
        %v638 = vpack.c.b16 %v515, %v514
        %v639 = vpack.c.b16 %v517, %v516
        %v640 = vpack.c.b16 %v519, %v518
        %v641 = vpack.c.b16 %v521, %v520
        %v642 = vpack.c.b16 %v523, %v522
        %v643 = vpack.c.b16 %v525, %v524
        %v644 = vpack.c.b16 %v527, %v526
        %v645 = vpack.c.b16 %v529, %v528
        %v646 = vpack.c.b16 %v531, %v530
        %v647 = vpack.c.b16 %v533, %v532
        %v648 = vpack.c.b16 %v535, %v534
        %v649 = vpack.c.b16 %v537, %v536
        %v650 = vpack.c.b16 %v539, %v538
        %v651 = vpack.c.b16 %v541, %v540
        %v652 = vpack.c.b16 %v543, %v542
        %v653 = vpack.c.b16 %v545, %v544
        %v654 = vpack.c.b16 %v547, %v546
        %v655 = vpack.c.b16 %v549, %v548
        %v656 = vpack.c.b16 %v551, %v550
        %v657 = vpack.c.b16 %v553, %v552
        %v658 = vpack.c.b16 %v555, %v554
        %v659 = vpack.c.b16 %v557, %v556
        %v660 = vpack.c.b16 %v559, %v558
        %v661 = vpack.c.b16 %v561, %v560
        %v662 = vpack.c.b16 %v563, %v562
        %v663 = vpack.c.b16 %v565, %v564
        %v664 = vpack.c.b16 %v567, %v566
        %v665 = vpack.c.b16 %v569, %v568
        %v666 = vpack.c.b16 %v571, %v570
        %v667 = vpack.c.b16 %v573, %v572
        %v668 = vpack.c.b16 %v575, %v574
        %v669 = vpack.c.b16 %v577, %v576
        %v670 = vpack.c.b16 %v579, %v578
        %v671 = vpack.c.b16 %v581, %v580
        %v672 = vpack.c.b16 %v583, %v582
        %v673 = vpack.c.b16 %v585, %v584
        %v674 = vpack.c.b16 %v587, %v586
        %v675 = vpack.c.b16 %v589, %v588
        %v676 = vpack.c.b16 %v591, %v590
        %v677 = vpack.c.b16 %v593, %v592
        %v678 = vpack.c.b16 %v595, %v594
        %v679 = vpack.c.b16 %v597, %v596
        %v680 = vpack.c.b16 %v599, %v598
        %v681 = vpack.c.b16 %v601, %v600
        %v682 = vpack.c.b16 %v603, %v602
        %v683 = vpack.c.b16 %v605, %v604
        %v684 = vpack.c.b16 %v607, %v606
        %v685 = vpack.c.b16 %v609, %v608
        %v686 = vpack.c.b16 %v611, %v610
        %v687 = vpack.c.b16 %v613, %v612
        %v688 = vpack.c.b16 %v615, %v614
        %v689 = vpack.c.b16 %v617, %v616
        %v690 = vpack.c.b16 %v619, %v618
        %v691 = vpack.c.b16 %v621, %v620
        %v692 = vpack.c.b16 %v623, %v622
        %v693 = vpack.c.b16 %v625, %v624
        %v694 = vpack.c.b16 %v627, %v626
        %v695 = vpack.c.b16 %v629, %v628
        %v696 = vpack.c.b16 %v631, %v630
        %v697 = vpack.c.b16 %v633, %v632
        %v778 = vunpack.c.l.b16 %v362
        %v779 = vunpack.c.l.b16 %v363
        %v780 = vunpack.c.l.b16 %v364
        %v781 = vunpack.c.l.b16 %v365
        %v782 = vunpack.c.l.b16 %v366
        %v783 = vunpack.c.l.b16 %v367
        %v784 = vunpack.c.l.b16 %v368
        %v785 = vunpack.c.l.b16 %v369
        %v786 = vunpack.c.l.b16 %v370
        %v787 = vunpack.c.l.b16 %v371
        %v788 = vunpack.c.l.b16 %v372
        %v789 = vunpack.c.l.b16 %v373
        %v790 = vunpack.c.l.b16 %v374
        %v791 = vunpack.c.l.b16 %v375
        %v792 = vunpack.c.l.b16 %v376
        %v793 = vunpack.c.l.b16 %v377
        %v794 = vpack.c.b16 %v779, %v778
        %v795 = vpack.c.b16 %v781, %v780
        %v796 = vpack.c.b16 %v783, %v782
        %v797 = vpack.c.b16 %v785, %v784
        %v798 = vpack.c.b16 %v787, %v786
        %v799 = vpack.c.b16 %v789, %v788
        %v800 = vpack.c.b16 %v791, %v790
        %v801 = vpack.c.b16 %v793, %v792
        %810 = vmatprep.subr.bf16.mxu0 0
        %811 = vmatpush1.bf16.msra.mxu0 %v801
        %812 = vmatprep.subr.bf16.mxu0 0
        %813 = vmatpush1.bf16.msra.mxu0 %v800
        %814 = vmatprep.subr.bf16.mxu0 0
        %815 = vmatpush1.bf16.msra.mxu0 %v799
        %816 = vmatprep.subr.bf16.mxu0 0
        %817 = vmatpush1.bf16.msra.mxu0 %v798
        %818 = vmatprep.subr.bf16.mxu0 0
        %819 = vmatpush1.bf16.msra.mxu0 %v797
        %820 = vmatprep.subr.bf16.mxu0 0
        %821 = vmatpush1.bf16.msra.mxu0 %v796
        %822 = vmatprep.subr.bf16.mxu0 0
        %823 = vmatpush1.bf16.msra.mxu0 %v795
        %824 = vmatprep.subr.bf16.mxu0 0
        %825 = vmatpush1.bf16.msra.mxu0 %v794
        %826 = vmatprep.subr.bf16.mxu0 0
        %827 = vmatpush2.bf16.msra.mxu0 0
        %828 = vmatprep.subr.bf16.mxu0 0
        %829 = vmatpush2.bf16.msra.mxu0 0
        %830 = vmatprep.subr.bf16.mxu0 0
        %831 = vmatpush2.bf16.msra.mxu0 0
        %832 = vmatprep.subr.bf16.mxu0 0
        %833 = vmatpush2.bf16.msra.mxu0 0
        %834 = vmatprep.subr.bf16.mxu0 0
        %835 = vmatpush2.bf16.msra.mxu0 0
        %836 = vmatprep.subr.bf16.mxu0 0
        %837 = vmatpush2.bf16.msra.mxu0 0
        %838 = vmatprep.subr.bf16.mxu0 0
        %839 = vmatpush2.bf16.msra.mxu0 0
        %840 = vmatprep.subr.bf16.mxu0 0
        %841 = vmatpush2.bf16.msra.mxu0 0
        %842 = vmatprep.mubr.bf16.mxu0 0
        %843 = vmatmul.mubr.bf16.gmra.mxu0 %v634
        %v844 = vpop.f32.mrf.mxu0
        %v845 = vadd.f32 0.0, %v844
        %v846 = vpop.f32.mrf.mxu0
        %v847 = vpop.f32.mrf.mxu0
        %v848 = vadd.f32 0.0, %v847
        %v849 = vpop.f32.mrf.mxu0
        %850 = vmatprep.mubr.bf16.mxu0 0
        %851 = vmatmul.mubr.bf16.gmra.mxu0 %v635
        %v852 = vpop.f32.mrf.mxu0
        %v853 = vadd.f32 0.0, %v852
        %v854 = vpop.f32.mrf.mxu0
        %v855 = vpop.f32.mrf.mxu0
        %v856 = vadd.f32 0.0, %v855
        %v857 = vpop.f32.mrf.mxu0
        %858 = vmatprep.mubr.bf16.mxu0 0
        %859 = vmatmul.mubr.bf16.gmra.mxu0 %v636
        %v860 = vpop.f32.mrf.mxu0
        %v861 = vadd.f32 0.0, %v860
        %v862 = vpop.f32.mrf.mxu0
        %v863 = vpop.f32.mrf.mxu0
        %v864 = vadd.f32 0.0, %v863
        %v865 = vpop.f32.mrf.mxu0
        %866 = vmatprep.mubr.bf16.mxu0 0
        %867 = vmatmul.mubr.bf16.gmra.mxu0 %v637
        %v868 = vpop.f32.mrf.mxu0
        %v869 = vadd.f32 0.0, %v868
        %v870 = vpop.f32.mrf.mxu0
        %v871 = vpop.f32.mrf.mxu0
        %v872 = vadd.f32 0.0, %v871
        %v873 = vpop.f32.mrf.mxu0
        %874 = vmatprep.mubr.bf16.mxu0 0
        %875 = vmatmul.mubr.bf16.gmra.mxu0 %v638
        %v876 = vpop.f32.mrf.mxu0
        %v877 = vadd.f32 0.0, %v876
        %v878 = vpop.f32.mrf.mxu0
        %v879 = vpop.f32.mrf.mxu0
        %v880 = vadd.f32 0.0, %v879
        %v881 = vpop.f32.mrf.mxu0
        %882 = vmatprep.mubr.bf16.mxu0 0
        %883 = vmatmul.mubr.bf16.gmra.mxu0 %v639
        %v884 = vpop.f32.mrf.mxu0
        %v885 = vadd.f32 0.0, %v884
        %v886 = vpop.f32.mrf.mxu0
        %v887 = vpop.f32.mrf.mxu0
        %v888 = vadd.f32 0.0, %v887
        %v889 = vpop.f32.mrf.mxu0
        %890 = vmatprep.mubr.bf16.mxu0 0
        %891 = vmatmul.mubr.bf16.gmra.mxu0 %v640
        %v892 = vpop.f32.mrf.mxu0
        %v893 = vadd.f32 0.0, %v892
        %v894 = vpop.f32.mrf.mxu0
        %v895 = vpop.f32.mrf.mxu0
        %v896 = vadd.f32 0.0, %v895
        %v897 = vpop.f32.mrf.mxu0
        %898 = vmatprep.mubr.bf16.mxu0 0
        %899 = vmatmul.mubr.bf16.gmra.mxu0 %v641
        %v900 = vpop.f32.mrf.mxu0
        %v901 = vadd.f32 0.0, %v900
        %v902 = vpop.f32.mrf.mxu0
        %v903 = vpop.f32.mrf.mxu0
        %v904 = vadd.f32 0.0, %v903
        %v905 = vpop.f32.mrf.mxu0
        %906 = vmatprep.mubr.bf16.mxu0 0
        %907 = vmatmul.mubr.bf16.gmra.mxu0 %v642
        %v908 = vpop.f32.mrf.mxu0
        %v909 = vadd.f32 0.0, %v908
        %v910 = vpop.f32.mrf.mxu0
        %v911 = vpop.f32.mrf.mxu0
        %v912 = vadd.f32 0.0, %v911
        %v913 = vpop.f32.mrf.mxu0
        %914 = vmatprep.mubr.bf16.mxu0 0
        %915 = vmatmul.mubr.bf16.gmra.mxu0 %v643
        %v916 = vpop.f32.mrf.mxu0
        %v917 = vadd.f32 0.0, %v916
        %v918 = vpop.f32.mrf.mxu0
        %v919 = vpop.f32.mrf.mxu0
        %v920 = vadd.f32 0.0, %v919
        %v921 = vpop.f32.mrf.mxu0
        %922 = vmatprep.mubr.bf16.mxu0 0
        %923 = vmatmul.mubr.bf16.gmra.mxu0 %v644
        %v924 = vpop.f32.mrf.mxu0
        %v925 = vadd.f32 0.0, %v924
        %v926 = vpop.f32.mrf.mxu0
        %v927 = vpop.f32.mrf.mxu0
        %v928 = vadd.f32 0.0, %v927
        %v929 = vpop.f32.mrf.mxu0
        %930 = vmatprep.mubr.bf16.mxu0 0
        %931 = vmatmul.mubr.bf16.gmra.mxu0 %v645
        %v932 = vpop.f32.mrf.mxu0
        %v933 = vadd.f32 0.0, %v932
        %v934 = vpop.f32.mrf.mxu0
        %v935 = vpop.f32.mrf.mxu0
        %v936 = vadd.f32 0.0, %v935
        %v937 = vpop.f32.mrf.mxu0
        %938 = vmatprep.mubr.bf16.mxu0 0
        %939 = vmatmul.mubr.bf16.gmra.mxu0 %v646
        %v940 = vpop.f32.mrf.mxu0
        %v941 = vadd.f32 0.0, %v940
        %v942 = vpop.f32.mrf.mxu0
        %v943 = vpop.f32.mrf.mxu0
        %v944 = vadd.f32 0.0, %v943
        %v945 = vpop.f32.mrf.mxu0
        %946 = vmatprep.mubr.bf16.mxu0 0
        %947 = vmatmul.mubr.bf16.gmra.mxu0 %v647
        %v948 = vpop.f32.mrf.mxu0
        %v949 = vadd.f32 0.0, %v948
        %v950 = vpop.f32.mrf.mxu0
        %v951 = vpop.f32.mrf.mxu0
        %v952 = vadd.f32 0.0, %v951
        %v953 = vpop.f32.mrf.mxu0
        %954 = vmatprep.mubr.bf16.mxu0 0
        %955 = vmatmul.mubr.bf16.gmra.mxu0 %v648
        %v956 = vpop.f32.mrf.mxu0
        %v957 = vadd.f32 0.0, %v956
        %v958 = vpop.f32.mrf.mxu0
        %v959 = vpop.f32.mrf.mxu0
        %v960 = vadd.f32 0.0, %v959
        %v961 = vpop.f32.mrf.mxu0
        %962 = vmatprep.mubr.bf16.mxu0 0
        %963 = vmatmul.mubr.bf16.gmra.mxu0 %v649
        %v964 = vpop.f32.mrf.mxu0
        %v965 = vadd.f32 0.0, %v964
        %v966 = vpop.f32.mrf.mxu0
        %v967 = vpop.f32.mrf.mxu0
        %v968 = vadd.f32 0.0, %v967
        %v969 = vpop.f32.mrf.mxu0
        %970 = vmatprep.mubr.bf16.mxu0 0
        %971 = vmatmul.mubr.bf16.gmra.mxu0 %v650
        %v972 = vpop.f32.mrf.mxu0
        %v973 = vadd.f32 0.0, %v972
        %v974 = vpop.f32.mrf.mxu0
        %v975 = vpop.f32.mrf.mxu0
        %v976 = vadd.f32 0.0, %v975
        %v977 = vpop.f32.mrf.mxu0
        %978 = vmatprep.mubr.bf16.mxu0 0
        %979 = vmatmul.mubr.bf16.gmra.mxu0 %v651
        %v980 = vpop.f32.mrf.mxu0
        %v981 = vadd.f32 0.0, %v980
        %v982 = vpop.f32.mrf.mxu0
        %v983 = vpop.f32.mrf.mxu0
        %v984 = vadd.f32 0.0, %v983
        %v985 = vpop.f32.mrf.mxu0
        %986 = vmatprep.mubr.bf16.mxu0 0
        %987 = vmatmul.mubr.bf16.gmra.mxu0 %v652
        %v988 = vpop.f32.mrf.mxu0
        %v989 = vadd.f32 0.0, %v988
        %v990 = vpop.f32.mrf.mxu0
        %v991 = vpop.f32.mrf.mxu0
        %v992 = vadd.f32 0.0, %v991
        %v993 = vpop.f32.mrf.mxu0
        %994 = vmatprep.mubr.bf16.mxu0 0
        %995 = vmatmul.mubr.bf16.gmra.mxu0 %v653
        %v996 = vpop.f32.mrf.mxu0
        %v997 = vadd.f32 0.0, %v996
        %v998 = vpop.f32.mrf.mxu0
        %v999 = vpop.f32.mrf.mxu0
        %v1000 = vadd.f32 0.0, %v999
        %v1001 = vpop.f32.mrf.mxu0
        %1002 = vmatprep.mubr.bf16.mxu0 0
        %1003 = vmatmul.mubr.bf16.gmra.mxu0 %v654
        %v1004 = vpop.f32.mrf.mxu0
        %v1005 = vadd.f32 0.0, %v1004
        %v1006 = vpop.f32.mrf.mxu0
        %v1007 = vpop.f32.mrf.mxu0
        %v1008 = vadd.f32 0.0, %v1007
        %v1009 = vpop.f32.mrf.mxu0
        %1010 = vmatprep.mubr.bf16.mxu0 0
        %1011 = vmatmul.mubr.bf16.gmra.mxu0 %v655
        %v1012 = vpop.f32.mrf.mxu0
        %v1013 = vadd.f32 0.0, %v1012
        %v1014 = vpop.f32.mrf.mxu0
        %v1015 = vpop.f32.mrf.mxu0
        %v1016 = vadd.f32 0.0, %v1015
        %v1017 = vpop.f32.mrf.mxu0
        %1018 = vmatprep.mubr.bf16.mxu0 0
        %1019 = vmatmul.mubr.bf16.gmra.mxu0 %v656
        %v1020 = vpop.f32.mrf.mxu0
        %v1021 = vadd.f32 0.0, %v1020
        %v1022 = vpop.f32.mrf.mxu0
        %v1023 = vpop.f32.mrf.mxu0
        %v1024 = vadd.f32 0.0, %v1023
        %v1025 = vpop.f32.mrf.mxu0
        %1026 = vmatprep.mubr.bf16.mxu0 0
        %1027 = vmatmul.mubr.bf16.gmra.mxu0 %v657
        %v1028 = vpop.f32.mrf.mxu0
        %v1029 = vadd.f32 0.0, %v1028
        %v1030 = vpop.f32.mrf.mxu0
        %v1031 = vpop.f32.mrf.mxu0
        %v1032 = vadd.f32 0.0, %v1031
        %v1033 = vpop.f32.mrf.mxu0
        %1034 = vmatprep.mubr.bf16.mxu0 0
        %1035 = vmatmul.mubr.bf16.gmra.mxu0 %v658
        %v1036 = vpop.f32.mrf.mxu0
        %v1037 = vadd.f32 0.0, %v1036
        %v1038 = vpop.f32.mrf.mxu0
        %v1039 = vpop.f32.mrf.mxu0
        %v1040 = vadd.f32 0.0, %v1039
        %v1041 = vpop.f32.mrf.mxu0
        %1042 = vmatprep.mubr.bf16.mxu0 0
        %1043 = vmatmul.mubr.bf16.gmra.mxu0 %v659
        %v1044 = vpop.f32.mrf.mxu0
        %v1045 = vadd.f32 0.0, %v1044
        %v1046 = vpop.f32.mrf.mxu0
        %v1047 = vpop.f32.mrf.mxu0
        %v1048 = vadd.f32 0.0, %v1047
        %v1049 = vpop.f32.mrf.mxu0
        %1050 = vmatprep.mubr.bf16.mxu0 0
        %1051 = vmatmul.mubr.bf16.gmra.mxu0 %v660
        %v1052 = vpop.f32.mrf.mxu0
        %v1053 = vadd.f32 0.0, %v1052
        %v1054 = vpop.f32.mrf.mxu0
        %v1055 = vpop.f32.mrf.mxu0
        %v1056 = vadd.f32 0.0, %v1055
        %v1057 = vpop.f32.mrf.mxu0
        %1058 = vmatprep.mubr.bf16.mxu0 0
        %1059 = vmatmul.mubr.bf16.gmra.mxu0 %v661
        %v1060 = vpop.f32.mrf.mxu0
        %v1061 = vadd.f32 0.0, %v1060
        %v1062 = vpop.f32.mrf.mxu0
        %v1063 = vpop.f32.mrf.mxu0
        %v1064 = vadd.f32 0.0, %v1063
        %v1065 = vpop.f32.mrf.mxu0
        %1066 = vmatprep.mubr.bf16.mxu0 0
        %1067 = vmatmul.mubr.bf16.gmra.mxu0 %v662
        %v1068 = vpop.f32.mrf.mxu0
        %v1069 = vadd.f32 0.0, %v1068
        %v1070 = vpop.f32.mrf.mxu0
        %v1071 = vpop.f32.mrf.mxu0
        %v1072 = vadd.f32 0.0, %v1071
        %v1073 = vpop.f32.mrf.mxu0
        %1074 = vmatprep.mubr.bf16.mxu0 0
        %1075 = vmatmul.mubr.bf16.gmra.mxu0 %v663
        %v1076 = vpop.f32.mrf.mxu0
        %v1077 = vadd.f32 0.0, %v1076
        %v1078 = vpop.f32.mrf.mxu0
        %v1079 = vpop.f32.mrf.mxu0
        %v1080 = vadd.f32 0.0, %v1079
        %v1081 = vpop.f32.mrf.mxu0
        %1082 = vmatprep.mubr.bf16.mxu0 0
        %1083 = vmatmul.mubr.bf16.gmra.mxu0 %v664
        %v1084 = vpop.f32.mrf.mxu0
        %v1085 = vadd.f32 0.0, %v1084
        %v1086 = vpop.f32.mrf.mxu0
        %v1087 = vpop.f32.mrf.mxu0
        %v1088 = vadd.f32 0.0, %v1087
        %v1089 = vpop.f32.mrf.mxu0
        %1090 = vmatprep.mubr.bf16.mxu0 0
        %1091 = vmatmul.mubr.bf16.gmra.mxu0 %v665
        %v1092 = vpop.f32.mrf.mxu0
        %v1093 = vadd.f32 0.0, %v1092
        %v1094 = vpop.f32.mrf.mxu0
        %v1095 = vpop.f32.mrf.mxu0
        %v1096 = vadd.f32 0.0, %v1095
        %v1097 = vpop.f32.mrf.mxu0
        %1098 = vmatprep.mubr.bf16.mxu0 0
        %1099 = vmatmul.mubr.bf16.gmra.mxu0 %v666
        %v1100 = vpop.f32.mrf.mxu0
        %v1101 = vadd.f32 0.0, %v1100
        %v1102 = vpop.f32.mrf.mxu0
        %v1103 = vpop.f32.mrf.mxu0
        %v1104 = vadd.f32 0.0, %v1103
        %v1105 = vpop.f32.mrf.mxu0
        %1106 = vmatprep.mubr.bf16.mxu0 0
        %1107 = vmatmul.mubr.bf16.gmra.mxu0 %v667
        %v1108 = vpop.f32.mrf.mxu0
        %v1109 = vadd.f32 0.0, %v1108
        %v1110 = vpop.f32.mrf.mxu0
        %v1111 = vpop.f32.mrf.mxu0
        %v1112 = vadd.f32 0.0, %v1111
        %v1113 = vpop.f32.mrf.mxu0
        %1114 = vmatprep.mubr.bf16.mxu0 0
        %1115 = vmatmul.mubr.bf16.gmra.mxu0 %v668
        %v1116 = vpop.f32.mrf.mxu0
        %v1117 = vadd.f32 0.0, %v1116
        %v1118 = vpop.f32.mrf.mxu0
        %v1119 = vpop.f32.mrf.mxu0
        %v1120 = vadd.f32 0.0, %v1119
        %v1121 = vpop.f32.mrf.mxu0
        %1122 = vmatprep.mubr.bf16.mxu0 0
        %1123 = vmatmul.mubr.bf16.gmra.mxu0 %v669
        %v1124 = vpop.f32.mrf.mxu0
        %v1125 = vadd.f32 0.0, %v1124
        %v1126 = vpop.f32.mrf.mxu0
        %v1127 = vpop.f32.mrf.mxu0
        %v1128 = vadd.f32 0.0, %v1127
        %v1129 = vpop.f32.mrf.mxu0
        %1130 = vmatprep.mubr.bf16.mxu0 0
        %1131 = vmatmul.mubr.bf16.gmra.mxu0 %v670
        %v1132 = vpop.f32.mrf.mxu0
        %v1133 = vadd.f32 0.0, %v1132
        %v1134 = vpop.f32.mrf.mxu0
        %v1135 = vpop.f32.mrf.mxu0
        %v1136 = vadd.f32 0.0, %v1135
        %v1137 = vpop.f32.mrf.mxu0
        %1138 = vmatprep.mubr.bf16.mxu0 0
        %1139 = vmatmul.mubr.bf16.gmra.mxu0 %v671
        %v1140 = vpop.f32.mrf.mxu0
        %v1141 = vadd.f32 0.0, %v1140
        %v1142 = vpop.f32.mrf.mxu0
        %v1143 = vpop.f32.mrf.mxu0
        %v1144 = vadd.f32 0.0, %v1143
        %v1145 = vpop.f32.mrf.mxu0
        %1146 = vmatprep.mubr.bf16.mxu0 0
        %1147 = vmatmul.mubr.bf16.gmra.mxu0 %v672
        %v1148 = vpop.f32.mrf.mxu0
        %v1149 = vadd.f32 0.0, %v1148
        %v1150 = vpop.f32.mrf.mxu0
        %v1151 = vpop.f32.mrf.mxu0
        %v1152 = vadd.f32 0.0, %v1151
        %v1153 = vpop.f32.mrf.mxu0
        %1154 = vmatprep.mubr.bf16.mxu0 0
        %1155 = vmatmul.mubr.bf16.gmra.mxu0 %v673
        %v1156 = vpop.f32.mrf.mxu0
        %v1157 = vadd.f32 0.0, %v1156
        %v1158 = vpop.f32.mrf.mxu0
        %v1159 = vpop.f32.mrf.mxu0
        %v1160 = vadd.f32 0.0, %v1159
        %v1161 = vpop.f32.mrf.mxu0
        %1162 = vmatprep.mubr.bf16.mxu0 0
        %1163 = vmatmul.mubr.bf16.gmra.mxu0 %v674
        %v1164 = vpop.f32.mrf.mxu0
        %v1165 = vadd.f32 0.0, %v1164
        %v1166 = vpop.f32.mrf.mxu0
        %v1167 = vpop.f32.mrf.mxu0
        %v1168 = vadd.f32 0.0, %v1167
        %v1169 = vpop.f32.mrf.mxu0
        %1170 = vmatprep.mubr.bf16.mxu0 0
        %1171 = vmatmul.mubr.bf16.gmra.mxu0 %v675
        %v1172 = vpop.f32.mrf.mxu0
        %v1173 = vadd.f32 0.0, %v1172
        %v1174 = vpop.f32.mrf.mxu0
        %v1175 = vpop.f32.mrf.mxu0
        %v1176 = vadd.f32 0.0, %v1175
        %v1177 = vpop.f32.mrf.mxu0
        %1178 = vmatprep.mubr.bf16.mxu0 0
        %1179 = vmatmul.mubr.bf16.gmra.mxu0 %v676
        %v1180 = vpop.f32.mrf.mxu0
        %v1181 = vadd.f32 0.0, %v1180
        %v1182 = vpop.f32.mrf.mxu0
        %v1183 = vpop.f32.mrf.mxu0
        %v1184 = vadd.f32 0.0, %v1183
        %v1185 = vpop.f32.mrf.mxu0
        %1186 = vmatprep.mubr.bf16.mxu0 0
        %1187 = vmatmul.mubr.bf16.gmra.mxu0 %v677
        %v1188 = vpop.f32.mrf.mxu0
        %v1189 = vadd.f32 0.0, %v1188
        %v1190 = vpop.f32.mrf.mxu0
        %v1191 = vpop.f32.mrf.mxu0
        %v1192 = vadd.f32 0.0, %v1191
        %v1193 = vpop.f32.mrf.mxu0
        %1194 = vmatprep.mubr.bf16.mxu0 0
        %1195 = vmatmul.mubr.bf16.gmra.mxu0 %v678
        %v1196 = vpop.f32.mrf.mxu0
        %v1197 = vadd.f32 0.0, %v1196
        %v1198 = vpop.f32.mrf.mxu0
        %v1199 = vpop.f32.mrf.mxu0
        %v1200 = vadd.f32 0.0, %v1199
        %v1201 = vpop.f32.mrf.mxu0
        %1202 = vmatprep.mubr.bf16.mxu0 0
        %1203 = vmatmul.mubr.bf16.gmra.mxu0 %v679
        %v1204 = vpop.f32.mrf.mxu0
        %v1205 = vadd.f32 0.0, %v1204
        %v1206 = vpop.f32.mrf.mxu0
        %v1207 = vpop.f32.mrf.mxu0
        %v1208 = vadd.f32 0.0, %v1207
        %v1209 = vpop.f32.mrf.mxu0
        %1210 = vmatprep.mubr.bf16.mxu0 0
        %1211 = vmatmul.mubr.bf16.gmra.mxu0 %v680
        %v1212 = vpop.f32.mrf.mxu0
        %v1213 = vadd.f32 0.0, %v1212
        %v1214 = vpop.f32.mrf.mxu0
        %v1215 = vpop.f32.mrf.mxu0
        %v1216 = vadd.f32 0.0, %v1215
        %v1217 = vpop.f32.mrf.mxu0
        %1218 = vmatprep.mubr.bf16.mxu0 0
        %1219 = vmatmul.mubr.bf16.gmra.mxu0 %v681
        %v1220 = vpop.f32.mrf.mxu0
        %v1221 = vadd.f32 0.0, %v1220
        %v1222 = vpop.f32.mrf.mxu0
        %v1223 = vpop.f32.mrf.mxu0
        %v1224 = vadd.f32 0.0, %v1223
        %v1225 = vpop.f32.mrf.mxu0
        %1226 = vmatprep.mubr.bf16.mxu0 0
        %1227 = vmatmul.mubr.bf16.gmra.mxu0 %v682
        %v1228 = vpop.f32.mrf.mxu0
        %v1229 = vadd.f32 0.0, %v1228
        %v1230 = vpop.f32.mrf.mxu0
        %v1231 = vpop.f32.mrf.mxu0
        %v1232 = vadd.f32 0.0, %v1231
        %v1233 = vpop.f32.mrf.mxu0
        %1234 = vmatprep.mubr.bf16.mxu0 0
        %1235 = vmatmul.mubr.bf16.gmra.mxu0 %v683
        %v1236 = vpop.f32.mrf.mxu0
        %v1237 = vadd.f32 0.0, %v1236
        %v1238 = vpop.f32.mrf.mxu0
        %v1239 = vpop.f32.mrf.mxu0
        %v1240 = vadd.f32 0.0, %v1239
        %v1241 = vpop.f32.mrf.mxu0
        %1242 = vmatprep.mubr.bf16.mxu0 0
        %1243 = vmatmul.mubr.bf16.gmra.mxu0 %v684
        %v1244 = vpop.f32.mrf.mxu0
        %v1245 = vadd.f32 0.0, %v1244
        %v1246 = vpop.f32.mrf.mxu0
        %v1247 = vpop.f32.mrf.mxu0
        %v1248 = vadd.f32 0.0, %v1247
        %v1249 = vpop.f32.mrf.mxu0
        %1250 = vmatprep.mubr.bf16.mxu0 0
        %1251 = vmatmul.mubr.bf16.gmra.mxu0 %v685
        %v1252 = vpop.f32.mrf.mxu0
        %v1253 = vadd.f32 0.0, %v1252
        %v1254 = vpop.f32.mrf.mxu0
        %v1255 = vpop.f32.mrf.mxu0
        %v1256 = vadd.f32 0.0, %v1255
        %v1257 = vpop.f32.mrf.mxu0
        %1258 = vmatprep.mubr.bf16.mxu0 0
        %1259 = vmatmul.mubr.bf16.gmra.mxu0 %v686
        %v1260 = vpop.f32.mrf.mxu0
        %v1261 = vadd.f32 0.0, %v1260
        %v1262 = vpop.f32.mrf.mxu0
        %v1263 = vpop.f32.mrf.mxu0
        %v1264 = vadd.f32 0.0, %v1263
        %v1265 = vpop.f32.mrf.mxu0
        %1266 = vmatprep.mubr.bf16.mxu0 0
        %1267 = vmatmul.mubr.bf16.gmra.mxu0 %v687
        %v1268 = vpop.f32.mrf.mxu0
        %v1269 = vadd.f32 0.0, %v1268
        %v1270 = vpop.f32.mrf.mxu0
        %v1271 = vpop.f32.mrf.mxu0
        %v1272 = vadd.f32 0.0, %v1271
        %v1273 = vpop.f32.mrf.mxu0
        %1274 = vmatprep.mubr.bf16.mxu0 0
        %1275 = vmatmul.mubr.bf16.gmra.mxu0 %v688
        %v1276 = vpop.f32.mrf.mxu0
        %v1277 = vadd.f32 0.0, %v1276
        %v1278 = vpop.f32.mrf.mxu0
        %v1279 = vpop.f32.mrf.mxu0
        %v1280 = vadd.f32 0.0, %v1279
        %v1281 = vpop.f32.mrf.mxu0
        %1282 = vmatprep.mubr.bf16.mxu0 0
        %1283 = vmatmul.mubr.bf16.gmra.mxu0 %v689
        %v1284 = vpop.f32.mrf.mxu0
        %v1285 = vadd.f32 0.0, %v1284
        %v1286 = vpop.f32.mrf.mxu0
        %v1287 = vpop.f32.mrf.mxu0
        %v1288 = vadd.f32 0.0, %v1287
        %v1289 = vpop.f32.mrf.mxu0
        %1290 = vmatprep.mubr.bf16.mxu0 0
        %1291 = vmatmul.mubr.bf16.gmra.mxu0 %v690
        %v1292 = vpop.f32.mrf.mxu0
        %v1293 = vadd.f32 0.0, %v1292
        %v1294 = vpop.f32.mrf.mxu0
        %v1295 = vpop.f32.mrf.mxu0
        %v1296 = vadd.f32 0.0, %v1295
        %v1297 = vpop.f32.mrf.mxu0
        %1298 = vmatprep.mubr.bf16.mxu0 0
        %1299 = vmatmul.mubr.bf16.gmra.mxu0 %v691
        %v1300 = vpop.f32.mrf.mxu0
        %v1301 = vadd.f32 0.0, %v1300
        %v1302 = vpop.f32.mrf.mxu0
        %v1303 = vpop.f32.mrf.mxu0
        %v1304 = vadd.f32 0.0, %v1303
        %v1305 = vpop.f32.mrf.mxu0
        %1306 = vmatprep.mubr.bf16.mxu0 0
        %1307 = vmatmul.mubr.bf16.gmra.mxu0 %v692
        %v1308 = vpop.f32.mrf.mxu0
        %v1309 = vadd.f32 0.0, %v1308
        %v1310 = vpop.f32.mrf.mxu0
        %v1311 = vpop.f32.mrf.mxu0
        %v1312 = vadd.f32 0.0, %v1311
        %v1313 = vpop.f32.mrf.mxu0
        %1314 = vmatprep.mubr.bf16.mxu0 0
        %1315 = vmatmul.mubr.bf16.gmra.mxu0 %v693
        %v1316 = vpop.f32.mrf.mxu0
        %v1317 = vadd.f32 0.0, %v1316
        %v1318 = vpop.f32.mrf.mxu0
        %v1319 = vpop.f32.mrf.mxu0
        %v1320 = vadd.f32 0.0, %v1319
        %v1321 = vpop.f32.mrf.mxu0
        %1322 = vmatprep.mubr.bf16.mxu0 0
        %1323 = vmatmul.mubr.bf16.gmra.mxu0 %v694
        %v1324 = vpop.f32.mrf.mxu0
        %v1325 = vadd.f32 0.0, %v1324
        %v1326 = vpop.f32.mrf.mxu0
        %v1327 = vpop.f32.mrf.mxu0
        %v1328 = vadd.f32 0.0, %v1327
        %v1329 = vpop.f32.mrf.mxu0
        %1330 = vmatprep.mubr.bf16.mxu0 0
        %1331 = vmatmul.mubr.bf16.gmra.mxu0 %v695
        %v1332 = vpop.f32.mrf.mxu0
        %v1333 = vadd.f32 0.0, %v1332
        %v1334 = vpop.f32.mrf.mxu0
        %v1335 = vpop.f32.mrf.mxu0
        %v1336 = vadd.f32 0.0, %v1335
        %v1337 = vpop.f32.mrf.mxu0
        %1338 = vmatprep.mubr.bf16.mxu0 0
        %1339 = vmatmul.mubr.bf16.gmra.mxu0 %v696
        %v1340 = vpop.f32.mrf.mxu0
        %v1341 = vadd.f32 0.0, %v1340
        %v1342 = vpop.f32.mrf.mxu0
        %v1343 = vpop.f32.mrf.mxu0
        %v1344 = vadd.f32 0.0, %v1343
        %v1345 = vpop.f32.mrf.mxu0
        %1346 = vmatprep.mubr.bf16.mxu0 0
        %1347 = vmatmul.mubr.bf16.gmra.mxu0 %v697
        %v1348 = vpop.f32.mrf.mxu0
        %v1349 = vadd.f32 0.0, %v1348
        %v1350 = vpop.f32.mrf.mxu0
        %v1351 = vpop.f32.mrf.mxu0
        %v1352 = vadd.f32 0.0, %v1351
        %v1353 = vpop.f32.mrf.mxu0
        %1354 = vdwg.mxu0
        %v1355 = vld [vmem:[%s2] sm:$0x1]
        %v1357 = vlaneseq
        %v1358 = vshrl.u32 %v1357, 7
        %v1359 = vsub.s32 0, %v1358
        %v1360 = vrot.slane %v1355, %v1359
        %v1362 = vmul.f32 %v845, %v1360
        %v1363 = vmul.f32 %v848, %v1360
        %v1364 = vmul.f32 %v853, %v1360
        %v1365 = vmul.f32 %v856, %v1360
        %v1366 = vmul.f32 %v861, %v1360
        %v1367 = vmul.f32 %v864, %v1360
        %v1368 = vmul.f32 %v869, %v1360
        %v1369 = vmul.f32 %v872, %v1360
        %v1370 = vmul.f32 %v877, %v1360
        %v1371 = vmul.f32 %v880, %v1360
        %v1372 = vmul.f32 %v885, %v1360
        %v1373 = vmul.f32 %v888, %v1360
        %v1374 = vmul.f32 %v893, %v1360
        %v1375 = vmul.f32 %v896, %v1360
        %v1376 = vmul.f32 %v901, %v1360
        %v1377 = vmul.f32 %v904, %v1360
        %v1378 = vmul.f32 %v909, %v1360
        %v1379 = vmul.f32 %v912, %v1360
        %v1380 = vmul.f32 %v917, %v1360
        %v1381 = vmul.f32 %v920, %v1360
        %v1382 = vmul.f32 %v925, %v1360
        %v1383 = vmul.f32 %v928, %v1360
        %v1384 = vmul.f32 %v933, %v1360
        %v1385 = vmul.f32 %v936, %v1360
        %v1386 = vmul.f32 %v941, %v1360
        %v1387 = vmul.f32 %v944, %v1360
        %v1388 = vmul.f32 %v949, %v1360
        %v1389 = vmul.f32 %v952, %v1360
        %v1390 = vmul.f32 %v957, %v1360
        %v1391 = vmul.f32 %v960, %v1360
        %v1392 = vmul.f32 %v965, %v1360
        %v1393 = vmul.f32 %v968, %v1360
        %v1394 = vmul.f32 %v973, %v1360
        %v1395 = vmul.f32 %v976, %v1360
        %v1396 = vmul.f32 %v981, %v1360
        %v1397 = vmul.f32 %v984, %v1360
        %v1398 = vmul.f32 %v989, %v1360
        %v1399 = vmul.f32 %v992, %v1360
        %v1400 = vmul.f32 %v997, %v1360
        %v1401 = vmul.f32 %v1000, %v1360
        %v1402 = vmul.f32 %v1005, %v1360
        %v1403 = vmul.f32 %v1008, %v1360
        %v1404 = vmul.f32 %v1013, %v1360
        %v1405 = vmul.f32 %v1016, %v1360
        %v1406 = vmul.f32 %v1021, %v1360
        %v1407 = vmul.f32 %v1024, %v1360
        %v1408 = vmul.f32 %v1029, %v1360
        %v1409 = vmul.f32 %v1032, %v1360
        %v1410 = vmul.f32 %v1037, %v1360
        %v1411 = vmul.f32 %v1040, %v1360
        %v1412 = vmul.f32 %v1045, %v1360
        %v1413 = vmul.f32 %v1048, %v1360
        %v1414 = vmul.f32 %v1053, %v1360
        %v1415 = vmul.f32 %v1056, %v1360
        %v1416 = vmul.f32 %v1061, %v1360
        %v1417 = vmul.f32 %v1064, %v1360
        %v1418 = vmul.f32 %v1069, %v1360
        %v1419 = vmul.f32 %v1072, %v1360
        %v1420 = vmul.f32 %v1077, %v1360
        %v1421 = vmul.f32 %v1080, %v1360
        %v1422 = vmul.f32 %v1085, %v1360
        %v1423 = vmul.f32 %v1088, %v1360
        %v1424 = vmul.f32 %v1093, %v1360
        %v1425 = vmul.f32 %v1096, %v1360
        %v1426 = vmul.f32 %v1101, %v1360
        %v1427 = vmul.f32 %v1104, %v1360
        %v1428 = vmul.f32 %v1109, %v1360
        %v1429 = vmul.f32 %v1112, %v1360
        %v1430 = vmul.f32 %v1117, %v1360
        %v1431 = vmul.f32 %v1120, %v1360
        %v1432 = vmul.f32 %v1125, %v1360
        %v1433 = vmul.f32 %v1128, %v1360
        %v1434 = vmul.f32 %v1133, %v1360
        %v1435 = vmul.f32 %v1136, %v1360
        %v1436 = vmul.f32 %v1141, %v1360
        %v1437 = vmul.f32 %v1144, %v1360
        %v1438 = vmul.f32 %v1149, %v1360
        %v1439 = vmul.f32 %v1152, %v1360
        %v1440 = vmul.f32 %v1157, %v1360
        %v1441 = vmul.f32 %v1160, %v1360
        %v1442 = vmul.f32 %v1165, %v1360
        %v1443 = vmul.f32 %v1168, %v1360
        %v1444 = vmul.f32 %v1173, %v1360
        %v1445 = vmul.f32 %v1176, %v1360
        %v1446 = vmul.f32 %v1181, %v1360
        %v1447 = vmul.f32 %v1184, %v1360
        %v1448 = vmul.f32 %v1189, %v1360
        %v1449 = vmul.f32 %v1192, %v1360
        %v1450 = vmul.f32 %v1197, %v1360
        %v1451 = vmul.f32 %v1200, %v1360
        %v1452 = vmul.f32 %v1205, %v1360
        %v1453 = vmul.f32 %v1208, %v1360
        %v1454 = vmul.f32 %v1213, %v1360
        %v1455 = vmul.f32 %v1216, %v1360
        %v1456 = vmul.f32 %v1221, %v1360
        %v1457 = vmul.f32 %v1224, %v1360
        %v1458 = vmul.f32 %v1229, %v1360
        %v1459 = vmul.f32 %v1232, %v1360
        %v1460 = vmul.f32 %v1237, %v1360
        %v1461 = vmul.f32 %v1240, %v1360
        %v1462 = vmul.f32 %v1245, %v1360
        %v1463 = vmul.f32 %v1248, %v1360
        %v1464 = vmul.f32 %v1253, %v1360
        %v1465 = vmul.f32 %v1256, %v1360
        %v1466 = vmul.f32 %v1261, %v1360
        %v1467 = vmul.f32 %v1264, %v1360
        %v1468 = vmul.f32 %v1269, %v1360
        %v1469 = vmul.f32 %v1272, %v1360
        %v1470 = vmul.f32 %v1277, %v1360
        %v1471 = vmul.f32 %v1280, %v1360
        %v1472 = vmul.f32 %v1285, %v1360
        %v1473 = vmul.f32 %v1288, %v1360
        %v1474 = vmul.f32 %v1293, %v1360
        %v1475 = vmul.f32 %v1296, %v1360
        %v1476 = vmul.f32 %v1301, %v1360
        %v1477 = vmul.f32 %v1304, %v1360
        %v1478 = vmul.f32 %v1309, %v1360
        %v1479 = vmul.f32 %v1312, %v1360
        %v1480 = vmul.f32 %v1317, %v1360
        %v1481 = vmul.f32 %v1320, %v1360
        %v1482 = vmul.f32 %v1325, %v1360
        %v1483 = vmul.f32 %v1328, %v1360
        %v1484 = vmul.f32 %v1333, %v1360
        %v1485 = vmul.f32 %v1336, %v1360
        %v1486 = vmul.f32 %v1341, %v1360
        %v1487 = vmul.f32 %v1344, %v1360
        %v1488 = vmul.f32 %v1349, %v1360
        %v1489 = vmul.f32 %v1352, %v1360
        %v1490 = vld [vmem:[%s3] sm:$0x1]
        %v1492 = vlaneseq
        %v1493 = vshrl.u32 %v1492, 7
        %v1494 = vsub.s32 0, %v1493
        %v1495 = vrot.slane %v1490, %v1494
        %v1497 = vadd.f32 %v1362, %v1495
        %v1498 = vadd.f32 %v1363, %v1495
        %v1499 = vadd.f32 %v1364, %v1495
        %v1500 = vadd.f32 %v1365, %v1495
        %v1501 = vadd.f32 %v1366, %v1495
        %v1502 = vadd.f32 %v1367, %v1495
        %v1503 = vadd.f32 %v1368, %v1495
        %v1504 = vadd.f32 %v1369, %v1495
        %v1505 = vadd.f32 %v1370, %v1495
        %v1506 = vadd.f32 %v1371, %v1495
        %v1507 = vadd.f32 %v1372, %v1495
        %v1508 = vadd.f32 %v1373, %v1495
        %v1509 = vadd.f32 %v1374, %v1495
        %v1510 = vadd.f32 %v1375, %v1495
        %v1511 = vadd.f32 %v1376, %v1495
        %v1512 = vadd.f32 %v1377, %v1495
        %v1513 = vadd.f32 %v1378, %v1495
        %v1514 = vadd.f32 %v1379, %v1495
        %v1515 = vadd.f32 %v1380, %v1495
        %v1516 = vadd.f32 %v1381, %v1495
        %v1517 = vadd.f32 %v1382, %v1495
        %v1518 = vadd.f32 %v1383, %v1495
        %v1519 = vadd.f32 %v1384, %v1495
        %v1520 = vadd.f32 %v1385, %v1495
        %v1521 = vadd.f32 %v1386, %v1495
        %v1522 = vadd.f32 %v1387, %v1495
        %v1523 = vadd.f32 %v1388, %v1495
        %v1524 = vadd.f32 %v1389, %v1495
        %v1525 = vadd.f32 %v1390, %v1495
        %v1526 = vadd.f32 %v1391, %v1495
        %v1527 = vadd.f32 %v1392, %v1495
        %v1528 = vadd.f32 %v1393, %v1495
        %v1529 = vadd.f32 %v1394, %v1495
        %v1530 = vadd.f32 %v1395, %v1495
        %v1531 = vadd.f32 %v1396, %v1495
        %v1532 = vadd.f32 %v1397, %v1495
        %v1533 = vadd.f32 %v1398, %v1495
        %v1534 = vadd.f32 %v1399, %v1495
        %v1535 = vadd.f32 %v1400, %v1495
        %v1536 = vadd.f32 %v1401, %v1495
        %v1537 = vadd.f32 %v1402, %v1495
        %v1538 = vadd.f32 %v1403, %v1495
        %v1539 = vadd.f32 %v1404, %v1495
        %v1540 = vadd.f32 %v1405, %v1495
        %v1541 = vadd.f32 %v1406, %v1495
        %v1542 = vadd.f32 %v1407, %v1495
        %v1543 = vadd.f32 %v1408, %v1495
        %v1544 = vadd.f32 %v1409, %v1495
        %v1545 = vadd.f32 %v1410, %v1495
        %v1546 = vadd.f32 %v1411, %v1495
        %v1547 = vadd.f32 %v1412, %v1495
        %v1548 = vadd.f32 %v1413, %v1495
        %v1549 = vadd.f32 %v1414, %v1495
        %v1550 = vadd.f32 %v1415, %v1495
        %v1551 = vadd.f32 %v1416, %v1495
        %v1552 = vadd.f32 %v1417, %v1495
        %v1553 = vadd.f32 %v1418, %v1495
        %v1554 = vadd.f32 %v1419, %v1495
        %v1555 = vadd.f32 %v1420, %v1495
        %v1556 = vadd.f32 %v1421, %v1495
        %v1557 = vadd.f32 %v1422, %v1495
        %v1558 = vadd.f32 %v1423, %v1495
        %v1559 = vadd.f32 %v1424, %v1495
        %v1560 = vadd.f32 %v1425, %v1495
        %v1561 = vadd.f32 %v1426, %v1495
        %v1562 = vadd.f32 %v1427, %v1495
        %v1563 = vadd.f32 %v1428, %v1495
        %v1564 = vadd.f32 %v1429, %v1495
        %v1565 = vadd.f32 %v1430, %v1495
        %v1566 = vadd.f32 %v1431, %v1495
        %v1567 = vadd.f32 %v1432, %v1495
        %v1568 = vadd.f32 %v1433, %v1495
        %v1569 = vadd.f32 %v1434, %v1495
        %v1570 = vadd.f32 %v1435, %v1495
        %v1571 = vadd.f32 %v1436, %v1495
        %v1572 = vadd.f32 %v1437, %v1495
        %v1573 = vadd.f32 %v1438, %v1495
        %v1574 = vadd.f32 %v1439, %v1495
        %v1575 = vadd.f32 %v1440, %v1495
        %v1576 = vadd.f32 %v1441, %v1495
        %v1577 = vadd.f32 %v1442, %v1495
        %v1578 = vadd.f32 %v1443, %v1495
        %v1579 = vadd.f32 %v1444, %v1495
        %v1580 = vadd.f32 %v1445, %v1495
        %v1581 = vadd.f32 %v1446, %v1495
        %v1582 = vadd.f32 %v1447, %v1495
        %v1583 = vadd.f32 %v1448, %v1495
        %v1584 = vadd.f32 %v1449, %v1495
        %v1585 = vadd.f32 %v1450, %v1495
        %v1586 = vadd.f32 %v1451, %v1495
        %v1587 = vadd.f32 %v1452, %v1495
        %v1588 = vadd.f32 %v1453, %v1495
        %v1589 = vadd.f32 %v1454, %v1495
        %v1590 = vadd.f32 %v1455, %v1495
        %v1591 = vadd.f32 %v1456, %v1495
        %v1592 = vadd.f32 %v1457, %v1495
        %v1593 = vadd.f32 %v1458, %v1495
        %v1594 = vadd.f32 %v1459, %v1495
        %v1595 = vadd.f32 %v1460, %v1495
        %v1596 = vadd.f32 %v1461, %v1495
        %v1597 = vadd.f32 %v1462, %v1495
        %v1598 = vadd.f32 %v1463, %v1495
        %v1599 = vadd.f32 %v1464, %v1495
        %v1600 = vadd.f32 %v1465, %v1495
        %v1601 = vadd.f32 %v1466, %v1495
        %v1602 = vadd.f32 %v1467, %v1495
        %v1603 = vadd.f32 %v1468, %v1495
        %v1604 = vadd.f32 %v1469, %v1495
        %v1605 = vadd.f32 %v1470, %v1495
        %v1606 = vadd.f32 %v1471, %v1495
        %v1607 = vadd.f32 %v1472, %v1495
        %v1608 = vadd.f32 %v1473, %v1495
        %v1609 = vadd.f32 %v1474, %v1495
        %v1610 = vadd.f32 %v1475, %v1495
        %v1611 = vadd.f32 %v1476, %v1495
        %v1612 = vadd.f32 %v1477, %v1495
        %v1613 = vadd.f32 %v1478, %v1495
        %v1614 = vadd.f32 %v1479, %v1495
        %v1615 = vadd.f32 %v1480, %v1495
        %v1616 = vadd.f32 %v1481, %v1495
        %v1617 = vadd.f32 %v1482, %v1495
        %v1618 = vadd.f32 %v1483, %v1495
        %v1619 = vadd.f32 %v1484, %v1495
        %v1620 = vadd.f32 %v1485, %v1495
        %v1621 = vadd.f32 %v1486, %v1495
        %v1622 = vadd.f32 %v1487, %v1495
        %v1623 = vadd.f32 %v1488, %v1495
        %v1624 = vadd.f32 %v1489, %v1495
        %v1625 = vmax.f32 %v1497, 0.0
        %v1626 = vmax.f32 %v1498, 0.0
        %v1627 = vmax.f32 %v1499, 0.0
        %v1628 = vmax.f32 %v1500, 0.0
        %v1629 = vmax.f32 %v1501, 0.0
        %v1630 = vmax.f32 %v1502, 0.0
        %v1631 = vmax.f32 %v1503, 0.0
        %v1632 = vmax.f32 %v1504, 0.0
        %v1633 = vmax.f32 %v1505, 0.0
        %v1634 = vmax.f32 %v1506, 0.0
        %v1635 = vmax.f32 %v1507, 0.0
        %v1636 = vmax.f32 %v1508, 0.0
        %v1637 = vmax.f32 %v1509, 0.0
        %v1638 = vmax.f32 %v1510, 0.0
        %v1639 = vmax.f32 %v1511, 0.0
        %v1640 = vmax.f32 %v1512, 0.0
        %v1641 = vmax.f32 %v1513, 0.0
        %v1642 = vmax.f32 %v1514, 0.0
        %v1643 = vmax.f32 %v1515, 0.0
        %v1644 = vmax.f32 %v1516, 0.0
        %v1645 = vmax.f32 %v1517, 0.0
        %v1646 = vmax.f32 %v1518, 0.0
        %v1647 = vmax.f32 %v1519, 0.0
        %v1648 = vmax.f32 %v1520, 0.0
        %v1649 = vmax.f32 %v1521, 0.0
        %v1650 = vmax.f32 %v1522, 0.0
        %v1651 = vmax.f32 %v1523, 0.0
        %v1652 = vmax.f32 %v1524, 0.0
        %v1653 = vmax.f32 %v1525, 0.0
        %v1654 = vmax.f32 %v1526, 0.0
        %v1655 = vmax.f32 %v1527, 0.0
        %v1656 = vmax.f32 %v1528, 0.0
        %v1657 = vmax.f32 %v1529, 0.0
        %v1658 = vmax.f32 %v1530, 0.0
        %v1659 = vmax.f32 %v1531, 0.0
        %v1660 = vmax.f32 %v1532, 0.0
        %v1661 = vmax.f32 %v1533, 0.0
        %v1662 = vmax.f32 %v1534, 0.0
        %v1663 = vmax.f32 %v1535, 0.0
        %v1664 = vmax.f32 %v1536, 0.0
        %v1665 = vmax.f32 %v1537, 0.0
        %v1666 = vmax.f32 %v1538, 0.0
        %v1667 = vmax.f32 %v1539, 0.0
        %v1668 = vmax.f32 %v1540, 0.0
        %v1669 = vmax.f32 %v1541, 0.0
        %v1670 = vmax.f32 %v1542, 0.0
        %v1671 = vmax.f32 %v1543, 0.0
        %v1672 = vmax.f32 %v1544, 0.0
        %v1673 = vmax.f32 %v1545, 0.0
        %v1674 = vmax.f32 %v1546, 0.0
        %v1675 = vmax.f32 %v1547, 0.0
        %v1676 = vmax.f32 %v1548, 0.0
        %v1677 = vmax.f32 %v1549, 0.0
        %v1678 = vmax.f32 %v1550, 0.0
        %v1679 = vmax.f32 %v1551, 0.0
        %v1680 = vmax.f32 %v1552, 0.0
        %v1681 = vmax.f32 %v1553, 0.0
        %v1682 = vmax.f32 %v1554, 0.0
        %v1683 = vmax.f32 %v1555, 0.0
        %v1684 = vmax.f32 %v1556, 0.0
        %v1685 = vmax.f32 %v1557, 0.0
        %v1686 = vmax.f32 %v1558, 0.0
        %v1687 = vmax.f32 %v1559, 0.0
        %v1688 = vmax.f32 %v1560, 0.0
        %v1689 = vmax.f32 %v1561, 0.0
        %v1690 = vmax.f32 %v1562, 0.0
        %v1691 = vmax.f32 %v1563, 0.0
        %v1692 = vmax.f32 %v1564, 0.0
        %v1693 = vmax.f32 %v1565, 0.0
        %v1694 = vmax.f32 %v1566, 0.0
        %v1695 = vmax.f32 %v1567, 0.0
        %v1696 = vmax.f32 %v1568, 0.0
        %v1697 = vmax.f32 %v1569, 0.0
        %v1698 = vmax.f32 %v1570, 0.0
        %v1699 = vmax.f32 %v1571, 0.0
        %v1700 = vmax.f32 %v1572, 0.0
        %v1701 = vmax.f32 %v1573, 0.0
        %v1702 = vmax.f32 %v1574, 0.0
        %v1703 = vmax.f32 %v1575, 0.0
        %v1704 = vmax.f32 %v1576, 0.0
        %v1705 = vmax.f32 %v1577, 0.0
        %v1706 = vmax.f32 %v1578, 0.0
        %v1707 = vmax.f32 %v1579, 0.0
        %v1708 = vmax.f32 %v1580, 0.0
        %v1709 = vmax.f32 %v1581, 0.0
        %v1710 = vmax.f32 %v1582, 0.0
        %v1711 = vmax.f32 %v1583, 0.0
        %v1712 = vmax.f32 %v1584, 0.0
        %v1713 = vmax.f32 %v1585, 0.0
        %v1714 = vmax.f32 %v1586, 0.0
        %v1715 = vmax.f32 %v1587, 0.0
        %v1716 = vmax.f32 %v1588, 0.0
        %v1717 = vmax.f32 %v1589, 0.0
        %v1718 = vmax.f32 %v1590, 0.0
        %v1719 = vmax.f32 %v1591, 0.0
        %v1720 = vmax.f32 %v1592, 0.0
        %v1721 = vmax.f32 %v1593, 0.0
        %v1722 = vmax.f32 %v1594, 0.0
        %v1723 = vmax.f32 %v1595, 0.0
        %v1724 = vmax.f32 %v1596, 0.0
        %v1725 = vmax.f32 %v1597, 0.0
        %v1726 = vmax.f32 %v1598, 0.0
        %v1727 = vmax.f32 %v1599, 0.0
        %v1728 = vmax.f32 %v1600, 0.0
        %v1729 = vmax.f32 %v1601, 0.0
        %v1730 = vmax.f32 %v1602, 0.0
        %v1731 = vmax.f32 %v1603, 0.0
        %v1732 = vmax.f32 %v1604, 0.0
        %v1733 = vmax.f32 %v1605, 0.0
        %v1734 = vmax.f32 %v1606, 0.0
        %v1735 = vmax.f32 %v1607, 0.0
        %v1736 = vmax.f32 %v1608, 0.0
        %v1737 = vmax.f32 %v1609, 0.0
        %v1738 = vmax.f32 %v1610, 0.0
        %v1739 = vmax.f32 %v1611, 0.0
        %v1740 = vmax.f32 %v1612, 0.0
        %v1741 = vmax.f32 %v1613, 0.0
        %v1742 = vmax.f32 %v1614, 0.0
        %v1743 = vmax.f32 %v1615, 0.0
        %v1744 = vmax.f32 %v1616, 0.0
        %v1745 = vmax.f32 %v1617, 0.0
        %v1746 = vmax.f32 %v1618, 0.0
        %v1747 = vmax.f32 %v1619, 0.0
        %v1748 = vmax.f32 %v1620, 0.0
        %v1749 = vmax.f32 %v1621, 0.0
        %v1750 = vmax.f32 %v1622, 0.0
        %v1751 = vmax.f32 %v1623, 0.0
        %v1752 = vmax.f32 %v1624, 0.0
        %v1753 = vpack.c.bf16 %v1626, %v1625
        %v1754 = vpack.c.bf16 %v1628, %v1627
        %v1755 = vpack.c.bf16 %v1630, %v1629
        %v1756 = vpack.c.bf16 %v1632, %v1631
        %v1757 = vpack.c.bf16 %v1634, %v1633
        %v1758 = vpack.c.bf16 %v1636, %v1635
        %v1759 = vpack.c.bf16 %v1638, %v1637
        %v1760 = vpack.c.bf16 %v1640, %v1639
        %v1761 = vpack.c.bf16 %v1642, %v1641
        %v1762 = vpack.c.bf16 %v1644, %v1643
        %v1763 = vpack.c.bf16 %v1646, %v1645
        %v1764 = vpack.c.bf16 %v1648, %v1647
        %v1765 = vpack.c.bf16 %v1650, %v1649
        %v1766 = vpack.c.bf16 %v1652, %v1651
        %v1767 = vpack.c.bf16 %v1654, %v1653
        %v1768 = vpack.c.bf16 %v1656, %v1655
        %v1769 = vpack.c.bf16 %v1658, %v1657
        %v1770 = vpack.c.bf16 %v1660, %v1659
        %v1771 = vpack.c.bf16 %v1662, %v1661
        %v1772 = vpack.c.bf16 %v1664, %v1663
        %v1773 = vpack.c.bf16 %v1666, %v1665
        %v1774 = vpack.c.bf16 %v1668, %v1667
        %v1775 = vpack.c.bf16 %v1670, %v1669
        %v1776 = vpack.c.bf16 %v1672, %v1671
        %v1777 = vpack.c.bf16 %v1674, %v1673
        %v1778 = vpack.c.bf16 %v1676, %v1675
        %v1779 = vpack.c.bf16 %v1678, %v1677
        %v1780 = vpack.c.bf16 %v1680, %v1679
        %v1781 = vpack.c.bf16 %v1682, %v1681
        %v1782 = vpack.c.bf16 %v1684, %v1683
        %v1783 = vpack.c.bf16 %v1686, %v1685
        %v1784 = vpack.c.bf16 %v1688, %v1687
        %v1785 = vpack.c.bf16 %v1690, %v1689
        %v1786 = vpack.c.bf16 %v1692, %v1691
        %v1787 = vpack.c.bf16 %v1694, %v1693
        %v1788 = vpack.c.bf16 %v1696, %v1695
        %v1789 = vpack.c.bf16 %v1698, %v1697
        %v1790 = vpack.c.bf16 %v1700, %v1699
        %v1791 = vpack.c.bf16 %v1702, %v1701
        %v1792 = vpack.c.bf16 %v1704, %v1703
        %v1793 = vpack.c.bf16 %v1706, %v1705
        %v1794 = vpack.c.bf16 %v1708, %v1707
        %v1795 = vpack.c.bf16 %v1710, %v1709
        %v1796 = vpack.c.bf16 %v1712, %v1711
        %v1797 = vpack.c.bf16 %v1714, %v1713
        %v1798 = vpack.c.bf16 %v1716, %v1715
        %v1799 = vpack.c.bf16 %v1718, %v1717
        %v1800 = vpack.c.bf16 %v1720, %v1719
        %v1801 = vpack.c.bf16 %v1722, %v1721
        %v1802 = vpack.c.bf16 %v1724, %v1723
        %v1803 = vpack.c.bf16 %v1726, %v1725
        %v1804 = vpack.c.bf16 %v1728, %v1727
        %v1805 = vpack.c.bf16 %v1730, %v1729
        %v1806 = vpack.c.bf16 %v1732, %v1731
        %v1807 = vpack.c.bf16 %v1734, %v1733
        %v1808 = vpack.c.bf16 %v1736, %v1735
        %v1809 = vpack.c.bf16 %v1738, %v1737
        %v1810 = vpack.c.bf16 %v1740, %v1739
        %v1811 = vpack.c.bf16 %v1742, %v1741
        %v1812 = vpack.c.bf16 %v1744, %v1743
        %v1813 = vpack.c.bf16 %v1746, %v1745
        %v1814 = vpack.c.bf16 %v1748, %v1747
        %v1815 = vpack.c.bf16 %v1750, %v1749
        %v1816 = vpack.c.bf16 %v1752, %v1751
        %v1881 = vunpack.c.l.b16 %v1753
        %v1882 = vunpack.c.h.b16 %v1753
        %v1883 = vunpack.c.l.b16 %v1754
        %v1884 = vunpack.c.h.b16 %v1754
        %v1885 = vunpack.c.l.b16 %v1755
        %v1886 = vunpack.c.h.b16 %v1755
        %v1887 = vunpack.c.l.b16 %v1756
        %v1888 = vunpack.c.h.b16 %v1756
        %v1889 = vunpack.c.l.b16 %v1757
        %v1890 = vunpack.c.h.b16 %v1757
        %v1891 = vunpack.c.l.b16 %v1758
        %v1892 = vunpack.c.h.b16 %v1758
        %v1893 = vunpack.c.l.b16 %v1759
        %v1894 = vunpack.c.h.b16 %v1759
        %v1895 = vunpack.c.l.b16 %v1760
        %v1896 = vunpack.c.h.b16 %v1760
        %v1897 = vunpack.c.l.b16 %v1761
        %v1898 = vunpack.c.h.b16 %v1761
        %v1899 = vunpack.c.l.b16 %v1762
        %v1900 = vunpack.c.h.b16 %v1762
        %v1901 = vunpack.c.l.b16 %v1763
        %v1902 = vunpack.c.h.b16 %v1763
        %v1903 = vunpack.c.l.b16 %v1764
        %v1904 = vunpack.c.h.b16 %v1764
        %v1905 = vunpack.c.l.b16 %v1765
        %v1906 = vunpack.c.h.b16 %v1765
        %v1907 = vunpack.c.l.b16 %v1766
        %v1908 = vunpack.c.h.b16 %v1766
        %v1909 = vunpack.c.l.b16 %v1767
        %v1910 = vunpack.c.h.b16 %v1767
        %v1911 = vunpack.c.l.b16 %v1768
        %v1912 = vunpack.c.h.b16 %v1768
        %v1913 = vunpack.c.l.b16 %v1769
        %v1914 = vunpack.c.h.b16 %v1769
        %v1915 = vunpack.c.l.b16 %v1770
        %v1916 = vunpack.c.h.b16 %v1770
        %v1917 = vunpack.c.l.b16 %v1771
        %v1918 = vunpack.c.h.b16 %v1771
        %v1919 = vunpack.c.l.b16 %v1772
        %v1920 = vunpack.c.h.b16 %v1772
        %v1921 = vunpack.c.l.b16 %v1773
        %v1922 = vunpack.c.h.b16 %v1773
        %v1923 = vunpack.c.l.b16 %v1774
        %v1924 = vunpack.c.h.b16 %v1774
        %v1925 = vunpack.c.l.b16 %v1775
        %v1926 = vunpack.c.h.b16 %v1775
        %v1927 = vunpack.c.l.b16 %v1776
        %v1928 = vunpack.c.h.b16 %v1776
        %v1929 = vunpack.c.l.b16 %v1777
        %v1930 = vunpack.c.h.b16 %v1777
        %v1931 = vunpack.c.l.b16 %v1778
        %v1932 = vunpack.c.h.b16 %v1778
        %v1933 = vunpack.c.l.b16 %v1779
        %v1934 = vunpack.c.h.b16 %v1779
        %v1935 = vunpack.c.l.b16 %v1780
        %v1936 = vunpack.c.h.b16 %v1780
        %v1937 = vunpack.c.l.b16 %v1781
        %v1938 = vunpack.c.h.b16 %v1781
        %v1939 = vunpack.c.l.b16 %v1782
        %v1940 = vunpack.c.h.b16 %v1782
        %v1941 = vunpack.c.l.b16 %v1783
        %v1942 = vunpack.c.h.b16 %v1783
        %v1943 = vunpack.c.l.b16 %v1784
        %v1944 = vunpack.c.h.b16 %v1784
        %v1945 = vunpack.c.l.b16 %v1785
        %v1946 = vunpack.c.h.b16 %v1785
        %v1947 = vunpack.c.l.b16 %v1786
        %v1948 = vunpack.c.h.b16 %v1786
        %v1949 = vunpack.c.l.b16 %v1787
        %v1950 = vunpack.c.h.b16 %v1787
        %v1951 = vunpack.c.l.b16 %v1788
        %v1952 = vunpack.c.h.b16 %v1788
        %v1953 = vunpack.c.l.b16 %v1789
        %v1954 = vunpack.c.h.b16 %v1789
        %v1955 = vunpack.c.l.b16 %v1790
        %v1956 = vunpack.c.h.b16 %v1790
        %v1957 = vunpack.c.l.b16 %v1791
        %v1958 = vunpack.c.h.b16 %v1791
        %v1959 = vunpack.c.l.b16 %v1792
        %v1960 = vunpack.c.h.b16 %v1792
        %v1961 = vunpack.c.l.b16 %v1793
        %v1962 = vunpack.c.h.b16 %v1793
        %v1963 = vunpack.c.l.b16 %v1794
        %v1964 = vunpack.c.h.b16 %v1794
        %v1965 = vunpack.c.l.b16 %v1795
        %v1966 = vunpack.c.h.b16 %v1795
        %v1967 = vunpack.c.l.b16 %v1796
        %v1968 = vunpack.c.h.b16 %v1796
        %v1969 = vunpack.c.l.b16 %v1797
        %v1970 = vunpack.c.h.b16 %v1797
        %v1971 = vunpack.c.l.b16 %v1798
        %v1972 = vunpack.c.h.b16 %v1798
        %v1973 = vunpack.c.l.b16 %v1799
        %v1974 = vunpack.c.h.b16 %v1799
        %v1975 = vunpack.c.l.b16 %v1800
        %v1976 = vunpack.c.h.b16 %v1800
        %v1977 = vunpack.c.l.b16 %v1801
        %v1978 = vunpack.c.h.b16 %v1801
        %v1979 = vunpack.c.l.b16 %v1802
        %v1980 = vunpack.c.h.b16 %v1802
        %v1981 = vunpack.c.l.b16 %v1803
        %v1982 = vunpack.c.h.b16 %v1803
        %v1983 = vunpack.c.l.b16 %v1804
        %v1984 = vunpack.c.h.b16 %v1804
        %v1985 = vunpack.c.l.b16 %v1805
        %v1986 = vunpack.c.h.b16 %v1805
        %v1987 = vunpack.c.l.b16 %v1806
        %v1988 = vunpack.c.h.b16 %v1806
        %v1989 = vunpack.c.l.b16 %v1807
        %v1990 = vunpack.c.h.b16 %v1807
        %v1991 = vunpack.c.l.b16 %v1808
        %v1992 = vunpack.c.h.b16 %v1808
        %v1993 = vunpack.c.l.b16 %v1809
        %v1994 = vunpack.c.h.b16 %v1809
        %v1995 = vunpack.c.l.b16 %v1810
        %v1996 = vunpack.c.h.b16 %v1810
        %v1997 = vunpack.c.l.b16 %v1811
        %v1998 = vunpack.c.h.b16 %v1811
        %v1999 = vunpack.c.l.b16 %v1812
        %v2000 = vunpack.c.h.b16 %v1812
        %v2001 = vunpack.c.l.b16 %v1813
        %v2002 = vunpack.c.h.b16 %v1813
        %v2003 = vunpack.c.l.b16 %v1814
        %v2004 = vunpack.c.h.b16 %v1814
        %v2005 = vunpack.c.l.b16 %v1815
        %v2006 = vunpack.c.h.b16 %v1815
        %v2007 = vunpack.c.l.b16 %v1816
        %v2008 = vunpack.c.h.b16 %v1816
        %v2009 = vpack.c.b16 %v1881, %v1881
        %v2010 = vpack.c.b16 %v1882, %v1882
        %v2011 = vpack.c.b16 %v1883, %v1883
        %v2012 = vpack.c.b16 %v1884, %v1884
        %v2013 = vpack.c.b16 %v1885, %v1885
        %v2014 = vpack.c.b16 %v1886, %v1886
        %v2015 = vpack.c.b16 %v1887, %v1887
        %v2016 = vpack.c.b16 %v1888, %v1888
        %v2017 = vpack.c.b16 %v1889, %v1889
        %v2018 = vpack.c.b16 %v1890, %v1890
        %v2019 = vpack.c.b16 %v1891, %v1891
        %v2020 = vpack.c.b16 %v1892, %v1892
        %v2021 = vpack.c.b16 %v1893, %v1893
        %v2022 = vpack.c.b16 %v1894, %v1894
        %v2023 = vpack.c.b16 %v1895, %v1895
        %v2024 = vpack.c.b16 %v1896, %v1896
        %v2025 = vpack.c.b16 %v1897, %v1897
        %v2026 = vpack.c.b16 %v1898, %v1898
        %v2027 = vpack.c.b16 %v1899, %v1899
        %v2028 = vpack.c.b16 %v1900, %v1900
        %v2029 = vpack.c.b16 %v1901, %v1901
        %v2030 = vpack.c.b16 %v1902, %v1902
        %v2031 = vpack.c.b16 %v1903, %v1903
        %v2032 = vpack.c.b16 %v1904, %v1904
        %v2033 = vpack.c.b16 %v1905, %v1905
        %v2034 = vpack.c.b16 %v1906, %v1906
        %v2035 = vpack.c.b16 %v1907, %v1907
        %v2036 = vpack.c.b16 %v1908, %v1908
        %v2037 = vpack.c.b16 %v1909, %v1909
        %v2038 = vpack.c.b16 %v1910, %v1910
        %v2039 = vpack.c.b16 %v1911, %v1911
        %v2040 = vpack.c.b16 %v1912, %v1912
        %v2041 = vpack.c.b16 %v1913, %v1913
        %v2042 = vpack.c.b16 %v1914, %v1914
        %v2043 = vpack.c.b16 %v1915, %v1915
        %v2044 = vpack.c.b16 %v1916, %v1916
        %v2045 = vpack.c.b16 %v1917, %v1917
        %v2046 = vpack.c.b16 %v1918, %v1918
        %v2047 = vpack.c.b16 %v1919, %v1919
        %v2048 = vpack.c.b16 %v1920, %v1920
        %v2049 = vpack.c.b16 %v1921, %v1921
        %v2050 = vpack.c.b16 %v1922, %v1922
        %v2051 = vpack.c.b16 %v1923, %v1923
        %v2052 = vpack.c.b16 %v1924, %v1924
        %v2053 = vpack.c.b16 %v1925, %v1925
        %v2054 = vpack.c.b16 %v1926, %v1926
        %v2055 = vpack.c.b16 %v1927, %v1927
        %v2056 = vpack.c.b16 %v1928, %v1928
        %v2057 = vpack.c.b16 %v1929, %v1929
        %v2058 = vpack.c.b16 %v1930, %v1930
        %v2059 = vpack.c.b16 %v1931, %v1931
        %v2060 = vpack.c.b16 %v1932, %v1932
        %v2061 = vpack.c.b16 %v1933, %v1933
        %v2062 = vpack.c.b16 %v1934, %v1934
        %v2063 = vpack.c.b16 %v1935, %v1935
        %v2064 = vpack.c.b16 %v1936, %v1936
        %v2065 = vpack.c.b16 %v1937, %v1937
        %v2066 = vpack.c.b16 %v1938, %v1938
        %v2067 = vpack.c.b16 %v1939, %v1939
        %v2068 = vpack.c.b16 %v1940, %v1940
        %v2069 = vpack.c.b16 %v1941, %v1941
        %v2070 = vpack.c.b16 %v1942, %v1942
        %v2071 = vpack.c.b16 %v1943, %v1943
        %v2072 = vpack.c.b16 %v1944, %v1944
        %v2073 = vpack.c.b16 %v1945, %v1945
        %v2074 = vpack.c.b16 %v1946, %v1946
        %v2075 = vpack.c.b16 %v1947, %v1947
        %v2076 = vpack.c.b16 %v1948, %v1948
        %v2077 = vpack.c.b16 %v1949, %v1949
        %v2078 = vpack.c.b16 %v1950, %v1950
        %v2079 = vpack.c.b16 %v1951, %v1951
        %v2080 = vpack.c.b16 %v1952, %v1952
        %v2081 = vpack.c.b16 %v1953, %v1953
        %v2082 = vpack.c.b16 %v1954, %v1954
        %v2083 = vpack.c.b16 %v1955, %v1955
        %v2084 = vpack.c.b16 %v1956, %v1956
        %v2085 = vpack.c.b16 %v1957, %v1957
        %v2086 = vpack.c.b16 %v1958, %v1958
        %v2087 = vpack.c.b16 %v1959, %v1959
        %v2088 = vpack.c.b16 %v1960, %v1960
        %v2089 = vpack.c.b16 %v1961, %v1961
        %v2090 = vpack.c.b16 %v1962, %v1962
        %v2091 = vpack.c.b16 %v1963, %v1963
        %v2092 = vpack.c.b16 %v1964, %v1964
        %v2093 = vpack.c.b16 %v1965, %v1965
        %v2094 = vpack.c.b16 %v1966, %v1966
        %v2095 = vpack.c.b16 %v1967, %v1967
        %v2096 = vpack.c.b16 %v1968, %v1968
        %v2097 = vpack.c.b16 %v1969, %v1969
        %v2098 = vpack.c.b16 %v1970, %v1970
        %v2099 = vpack.c.b16 %v1971, %v1971
        %v2100 = vpack.c.b16 %v1972, %v1972
        %v2101 = vpack.c.b16 %v1973, %v1973
        %v2102 = vpack.c.b16 %v1974, %v1974
        %v2103 = vpack.c.b16 %v1975, %v1975
        %v2104 = vpack.c.b16 %v1976, %v1976
        %v2105 = vpack.c.b16 %v1977, %v1977
        %v2106 = vpack.c.b16 %v1978, %v1978
        %v2107 = vpack.c.b16 %v1979, %v1979
        %v2108 = vpack.c.b16 %v1980, %v1980
        %v2109 = vpack.c.b16 %v1981, %v1981
        %v2110 = vpack.c.b16 %v1982, %v1982
        %v2111 = vpack.c.b16 %v1983, %v1983
        %v2112 = vpack.c.b16 %v1984, %v1984
        %v2113 = vpack.c.b16 %v1985, %v1985
        %v2114 = vpack.c.b16 %v1986, %v1986
        %v2115 = vpack.c.b16 %v1987, %v1987
        %v2116 = vpack.c.b16 %v1988, %v1988
        %v2117 = vpack.c.b16 %v1989, %v1989
        %v2118 = vpack.c.b16 %v1990, %v1990
        %v2119 = vpack.c.b16 %v1991, %v1991
        %v2120 = vpack.c.b16 %v1992, %v1992
        %v2121 = vpack.c.b16 %v1993, %v1993
        %v2122 = vpack.c.b16 %v1994, %v1994
        %v2123 = vpack.c.b16 %v1995, %v1995
        %v2124 = vpack.c.b16 %v1996, %v1996
        %v2125 = vpack.c.b16 %v1997, %v1997
        %v2126 = vpack.c.b16 %v1998, %v1998
        %v2127 = vpack.c.b16 %v1999, %v1999
        %v2128 = vpack.c.b16 %v2000, %v2000
        %v2129 = vpack.c.b16 %v2001, %v2001
        %v2130 = vpack.c.b16 %v2002, %v2002
        %v2131 = vpack.c.b16 %v2003, %v2003
        %v2132 = vpack.c.b16 %v2004, %v2004
        %v2133 = vpack.c.b16 %v2005, %v2005
        %v2134 = vpack.c.b16 %v2006, %v2006
        %v2135 = vpack.c.b16 %v2007, %v2007
        %v2136 = vpack.c.b16 %v2008, %v2008
        %2265 = vst [vmem:[%s230] sm:$0xf] %v2009
        %2266 = vst [vmem:[%s230 + $0x4] sm:$0xf] %v2010
        %2267 = vst [vmem:[%s230 + $0x8] sm:$0xf] %v2011
        %2268 = vst [vmem:[%s230 + $0xc] sm:$0xf] %v2012
        %2269 = vst [vmem:[%s230 + $0x10] sm:$0xf] %v2013
        %2270 = vst [vmem:[%s230 + $0x14] sm:$0xf] %v2014
        %2271 = vst [vmem:[%s230 + $0x18] sm:$0xf] %v2015
        %2272 = vst [vmem:[%s230 + $0x1c] sm:$0xf] %v2016
        %2273 = vst [vmem:[%s230 + $0x20] sm:$0xf] %v2017
        %2274 = vst [vmem:[%s230 + $0x24] sm:$0xf] %v2018
        %2275 = vst [vmem:[%s230 + $0x28] sm:$0xf] %v2019
        %2276 = vst [vmem:[%s230 + $0x2c] sm:$0xf] %v2020
        %2277 = vst [vmem:[%s230 + $0x30] sm:$0xf] %v2021
        %2278 = vst [vmem:[%s230 + $0x34] sm:$0xf] %v2022
        %2279 = vst [vmem:[%s230 + $0x38] sm:$0xf] %v2023
        %2280 = vst [vmem:[%s230 + $0x3c] sm:$0xf] %v2024
        %2281 = vst [vmem:[%s230 + $0x40] sm:$0xf] %v2025
        %2282 = vst [vmem:[%s230 + $0x44] sm:$0xf] %v2026
        %2283 = vst [vmem:[%s230 + $0x48] sm:$0xf] %v2027
        %2284 = vst [vmem:[%s230 + $0x4c] sm:$0xf] %v2028
        %2285 = vst [vmem:[%s230 + $0x50] sm:$0xf] %v2029
        %2286 = vst [vmem:[%s230 + $0x54] sm:$0xf] %v2030
        %2287 = vst [vmem:[%s230 + $0x58] sm:$0xf] %v2031
        %2288 = vst [vmem:[%s230 + $0x5c] sm:$0xf] %v2032
        %2289 = vst [vmem:[%s230 + $0x60] sm:$0xf] %v2033
        %2290 = vst [vmem:[%s230 + $0x64] sm:$0xf] %v2034
        %2291 = vst [vmem:[%s230 + $0x68] sm:$0xf] %v2035
        %2292 = vst [vmem:[%s230 + $0x6c] sm:$0xf] %v2036
        %2293 = vst [vmem:[%s230 + $0x70] sm:$0xf] %v2037
        %2294 = vst [vmem:[%s230 + $0x74] sm:$0xf] %v2038
        %2295 = vst [vmem:[%s230 + $0x78] sm:$0xf] %v2039
        %2296 = vst [vmem:[%s230 + $0x7c] sm:$0xf] %v2040
        %2297 = vst [vmem:[%s230 + $0x80] sm:$0xf] %v2041
        %2298 = vst [vmem:[%s230 + $0x84] sm:$0xf] %v2042
        %2299 = vst [vmem:[%s230 + $0x88] sm:$0xf] %v2043
        %2300 = vst [vmem:[%s230 + $0x8c] sm:$0xf] %v2044
        %2301 = vst [vmem:[%s230 + $0x90] sm:$0xf] %v2045
        %2302 = vst [vmem:[%s230 + $0x94] sm:$0xf] %v2046
        %2303 = vst [vmem:[%s230 + $0x98] sm:$0xf] %v2047
        %2304 = vst [vmem:[%s230 + $0x9c] sm:$0xf] %v2048
        %2305 = vst [vmem:[%s230 + $0xa0] sm:$0xf] %v2049
        %2306 = vst [vmem:[%s230 + $0xa4] sm:$0xf] %v2050
        %2307 = vst [vmem:[%s230 + $0xa8] sm:$0xf] %v2051
        %2308 = vst [vmem:[%s230 + $0xac] sm:$0xf] %v2052
        %2309 = vst [vmem:[%s230 + $0xb0] sm:$0xf] %v2053
        %2310 = vst [vmem:[%s230 + $0xb4] sm:$0xf] %v2054
        %2311 = vst [vmem:[%s230 + $0xb8] sm:$0xf] %v2055
        %2312 = vst [vmem:[%s230 + $0xbc] sm:$0xf] %v2056
        %2313 = vst [vmem:[%s230 + $0xc0] sm:$0xf] %v2057
        %2314 = vst [vmem:[%s230 + $0xc4] sm:$0xf] %v2058
        %2315 = vst [vmem:[%s230 + $0xc8] sm:$0xf] %v2059
        %2316 = vst [vmem:[%s230 + $0xcc] sm:$0xf] %v2060
        %2317 = vst [vmem:[%s230 + $0xd0] sm:$0xf] %v2061
        %2318 = vst [vmem:[%s230 + $0xd4] sm:$0xf] %v2062
        %2319 = vst [vmem:[%s230 + $0xd8] sm:$0xf] %v2063
        %2320 = vst [vmem:[%s230 + $0xdc] sm:$0xf] %v2064
        %2321 = vst [vmem:[%s230 + $0xe0] sm:$0xf] %v2065
        %2322 = vst [vmem:[%s230 + $0xe4] sm:$0xf] %v2066
        %2323 = vst [vmem:[%s230 + $0xe8] sm:$0xf] %v2067
        %2324 = vst [vmem:[%s230 + $0xec] sm:$0xf] %v2068
        %2325 = vst [vmem:[%s230 + $0xf0] sm:$0xf] %v2069
        %2326 = vst [vmem:[%s230 + $0xf4] sm:$0xf] %v2070
        %2327 = vst [vmem:[%s230 + $0xf8] sm:$0xf] %v2071
        %2328 = vst [vmem:[%s230 + $0xfc] sm:$0xf] %v2072
        %2329 = vst [vmem:[%s230 + $0x100] sm:$0xf] %v2073
        %2330 = vst [vmem:[%s230 + $0x104] sm:$0xf] %v2074
        %2331 = vst [vmem:[%s230 + $0x108] sm:$0xf] %v2075
        %2332 = vst [vmem:[%s230 + $0x10c] sm:$0xf] %v2076
        %2333 = vst [vmem:[%s230 + $0x110] sm:$0xf] %v2077
        %2334 = vst [vmem:[%s230 + $0x114] sm:$0xf] %v2078
        %2335 = vst [vmem:[%s230 + $0x118] sm:$0xf] %v2079
        %2336 = vst [vmem:[%s230 + $0x11c] sm:$0xf] %v2080
        %2337 = vst [vmem:[%s230 + $0x120] sm:$0xf] %v2081
        %2338 = vst [vmem:[%s230 + $0x124] sm:$0xf] %v2082
        %2339 = vst [vmem:[%s230 + $0x128] sm:$0xf] %v2083
        %2340 = vst [vmem:[%s230 + $0x12c] sm:$0xf] %v2084
        %2341 = vst [vmem:[%s230 + $0x130] sm:$0xf] %v2085
        %2342 = vst [vmem:[%s230 + $0x134] sm:$0xf] %v2086
        %2343 = vst [vmem:[%s230 + $0x138] sm:$0xf] %v2087
        %2344 = vst [vmem:[%s230 + $0x13c] sm:$0xf] %v2088
        %2345 = vst [vmem:[%s230 + $0x140] sm:$0xf] %v2089
        %2346 = vst [vmem:[%s230 + $0x144] sm:$0xf] %v2090
        %2347 = vst [vmem:[%s230 + $0x148] sm:$0xf] %v2091
        %2348 = vst [vmem:[%s230 + $0x14c] sm:$0xf] %v2092
        %2349 = vst [vmem:[%s230 + $0x150] sm:$0xf] %v2093
        %2350 = vst [vmem:[%s230 + $0x154] sm:$0xf] %v2094
        %2351 = vst [vmem:[%s230 + $0x158] sm:$0xf] %v2095
        %2352 = vst [vmem:[%s230 + $0x15c] sm:$0xf] %v2096
        %2353 = vst [vmem:[%s230 + $0x160] sm:$0xf] %v2097
        %2354 = vst [vmem:[%s230 + $0x164] sm:$0xf] %v2098
        %2355 = vst [vmem:[%s230 + $0x168] sm:$0xf] %v2099
        %2356 = vst [vmem:[%s230 + $0x16c] sm:$0xf] %v2100
        %2357 = vst [vmem:[%s230 + $0x170] sm:$0xf] %v2101
        %2358 = vst [vmem:[%s230 + $0x174] sm:$0xf] %v2102
        %2359 = vst [vmem:[%s230 + $0x178] sm:$0xf] %v2103
        %2360 = vst [vmem:[%s230 + $0x17c] sm:$0xf] %v2104
        %2361 = vst [vmem:[%s230 + $0x180] sm:$0xf] %v2105
        %2362 = vst [vmem:[%s230 + $0x184] sm:$0xf] %v2106
        %2363 = vst [vmem:[%s230 + $0x188] sm:$0xf] %v2107
        %2364 = vst [vmem:[%s230 + $0x18c] sm:$0xf] %v2108
        %2365 = vst [vmem:[%s230 + $0x190] sm:$0xf] %v2109
        %2366 = vst [vmem:[%s230 + $0x194] sm:$0xf] %v2110
        %2367 = vst [vmem:[%s230 + $0x198] sm:$0xf] %v2111
        %2368 = vst [vmem:[%s230 + $0x19c] sm:$0xf] %v2112
        %2369 = vst [vmem:[%s230 + $0x1a0] sm:$0xf] %v2113
        %2370 = vst [vmem:[%s230 + $0x1a4] sm:$0xf] %v2114
        %2371 = vst [vmem:[%s230 + $0x1a8] sm:$0xf] %v2115
        %2372 = vst [vmem:[%s230 + $0x1ac] sm:$0xf] %v2116
        %2373 = vst [vmem:[%s230 + $0x1b0] sm:$0xf] %v2117
        %2374 = vst [vmem:[%s230 + $0x1b4] sm:$0xf] %v2118
        %2375 = vst [vmem:[%s230 + $0x1b8] sm:$0xf] %v2119
        %2376 = vst [vmem:[%s230 + $0x1bc] sm:$0xf] %v2120
        %2377 = vst [vmem:[%s230 + $0x1c0] sm:$0xf] %v2121
        %2378 = vst [vmem:[%s230 + $0x1c4] sm:$0xf] %v2122
        %2379 = vst [vmem:[%s230 + $0x1c8] sm:$0xf] %v2123
        %2380 = vst [vmem:[%s230 + $0x1cc] sm:$0xf] %v2124
        %2381 = vst [vmem:[%s230 + $0x1d0] sm:$0xf] %v2125
        %2382 = vst [vmem:[%s230 + $0x1d4] sm:$0xf] %v2126
        %2383 = vst [vmem:[%s230 + $0x1d8] sm:$0xf] %v2127
        %2384 = vst [vmem:[%s230 + $0x1dc] sm:$0xf] %v2128
        %2385 = vst [vmem:[%s230 + $0x1e0] sm:$0xf] %v2129
        %2386 = vst [vmem:[%s230 + $0x1e4] sm:$0xf] %v2130
        %2387 = vst [vmem:[%s230 + $0x1e8] sm:$0xf] %v2131
        %2388 = vst [vmem:[%s230 + $0x1ec] sm:$0xf] %v2132
        %2389 = vst [vmem:[%s230 + $0x1f0] sm:$0xf] %v2133
        %2390 = vst [vmem:[%s230 + $0x1f4] sm:$0xf] %v2134
        %2391 = vst [vmem:[%s230 + $0x1f8] sm:$0xf] %v2135
        %2392 = vst [vmem:[%s230 + $0x1fc] sm:$0xf] %v2136
        %s2393 = sand.u32 %s119, 1
        %s2394 = scalar_lea.sflag [#allocation4], %s2393
        %s2395 = sand.u32 %s119, 1
        %s2396 = smul.addr %s2395, 512
        %s2397 = scalar_lea.vmem [#allocation7], %s2396
        // Predicated region
        $region45: #{tpu_custom_call.1} parent=35 // pred_check
          %p2398 = pneg %p129
        $region46: #{tpu_custom_call.1} parent=35 // pred_check_branch
          %2400 = sbr.rel (%p2398) target = $region48
        $region47: #{tpu_custom_call.1} parent=35 // pred_region
          %s2401 = smul.u32 128, %s22
          %s2403 = ssub.s32 8192, 8192
          %2404 = vsyncadd %s2394, %s2403
          %s2405 = smul.addr %s2401, 64
          %s2406 = scalar_lea.hbm %s4, %s2405
          %s2407 = sshll.u32 %s2397, 4
          %s2408 = int_to_ptr.vmem [resolvable:$true] %s2407
          %2413 = dma.vmem_to_hbm [thread:$0]  %s2408, 8192, %s2406, %s2394, 64, 64, 4
        $region48: #{tpu_custom_call.1} parent=35 // pred_fallthru
          _
      $region36: #{tpu_custom_call.1} parent=5 // pred_fallthru
        _
      %p2414 = scmp.le.s32.totalorder 2, %s17
      // Predicated region
      $region49: #{tpu_custom_call.1} parent=5 // pred_check
        %p2415 = pneg %p2414
      $region50: #{tpu_custom_call.1} parent=5 // pred_check_branch
        %2417 = sbr.rel (%p2415) target = $region52
      $region51: #{tpu_custom_call.1} parent=5 // pred_region
        %s2418 = ssub.s32 %s17, 2
        // Predicated region
        $region53: #{tpu_custom_call.1} parent=51 // pred_check
          %p2419 = pneg %p135
        $region54: #{tpu_custom_call.1} parent=51 // pred_check_branch
          %2421 = sbr.rel (%p2419) target = $region56
        $region55: #{tpu_custom_call.1} parent=51 // pred_region
          %s2422 = sand.u32 %s120, 1
          %s2423 = scalar_lea.sflag [#allocation4], %s2422
          %s2424 = sand.u32 %s120, 1
          %s2425 = smul.addr %s2424, 512
          %s2426 = scalar_lea.vmem [#allocation7], %s2425
          %2427 = dma.done %s2423, 8192
        $region56: #{tpu_custom_call.1} parent=51 // pred_fallthru
          _
      $region52: #{tpu_custom_call.1} parent=5 // pred_fallthru
        _
    $region6: #{tpu_custom_call.1} parent=1 // loop_footer
      %s21 = sadd.s32 1, %s17
    $region7: #{tpu_custom_call.1} parent=1 // loop_footer_branch
      %16 = sbr.rel target = $region3
    $region8: #{tpu_custom_call.1} parent=1 // loop_exit
      _
    %2428 = vsyncpa [#allocation3], 1
    %s2429 = scalar_lea.sflag [#allocation3], 1
    %2430 = vsyncpa %s2429, 1
    %2431 = vsyncpa [#allocation6], 1
    %2432 = vsyncpa [#allocation4], 1
    %s2433 = scalar_lea.sflag [#allocation4], 1
    %2434 = vsyncpa %s2433, 1

</llo_original>
